<compile_context>
chip_gen: v5e
topology: v5e:2x2
jax: 0.10.0
libtpu: 0.0.40
codegen_flags: <defaults>
</compile_context>

<pallas_src>
import math
from functools import partial

import jax
import jax.numpy as jnp
from jax import lax
from jax.experimental import pallas as pl
from jax.experimental.pallas import tpu as pltpu

FEATURE_DIM = 768
IEMOCAP_TAGS = ("angry", "happy", "neutral", "sad")   # dataset_type == 'IEMOCAP'
NUM_CLASS = len(IEMOCAP_TAGS)
DROPOUT_P = 0.5


def _round_up(x, m):
    return (x + m - 1) // m * m


def audio_head_kernel(hidden_ref, wp_ref, bp_ref, wc_ref, bc_ref,
                      drop_ref, labels_ref,
                      pred_ref, loss_ref, acc_ref,
                      *, seq_len, tile_t, inv_t):
    t = pl.program_id(1)
    nt = pl.num_programs(1)

    # ---- init accumulator at the start of each time sweep ----
    @pl.when(t == 0)
    def _init():
        acc_ref[...] = jnp.zeros_like(acc_ref)

    # ---- streaming time-sum of hidden states (pool before project) ----
    # .astype is a no-op for f32 input; also accepts bf16 hidden transparently.
    x = hidden_ref[...].astype(jnp.float32)

    if seq_len % tile_t == 0:
        # every time block is full -> plain streaming sum, no masking at all
        acc_ref[...] += jnp.sum(x, axis=1)
    else:
        @pl.when(t != nt - 1)
        def _full_block():
            acc_ref[...] += jnp.sum(x, axis=1)

        @pl.when(t == nt - 1)
        def _ragged_block():
            # The DMA for the last time block is clipped at the array bound;
            # rows >= rem hold stale VMEM (possibly NaN), so SELECT them to
            # zero (a multiply-by-zero mask would propagate NaN).
            rem = seq_len % tile_t
            tids = lax.broadcasted_iota(jnp.int32, (1, tile_t, 1), 1)
            acc_ref[...] += jnp.sum(jnp.where(tids < rem, x, 0.0), axis=1)

    # ---- finalize: projector -> dropout -> classifier -> CE (runs once) ----
    @pl.when(t == nt - 1)
    def _finalize():
        pooled = acc_ref[...] * inv_t                                   # (TB, D) f32

        # projector: Linear(D, D); mean-pool commutes with the shared Linear
        proj = jnp.dot(pooled, wp_ref[...],
                       preferred_element_type=jnp.float32) + bp_ref[...]

        # dropout: inverted-dropout scale mask precomputed in the wrapper
        dropped = proj * drop_ref[...]

        # classifier: Linear(D, C), lane-padded to C_PAD (padded cols ~ -1e30)
        logits = jnp.dot(dropped, wc_ref[...],
                         preferred_element_type=jnp.float32) + bc_ref[...]
        pred_ref[...] = logits

        # per-sample cross-entropy (batch mean is taken in the wrapper)
        m = jnp.max(logits, axis=1, keepdims=True)
        lse = jnp.log(jnp.sum(jnp.exp(logits - m), axis=1, keepdims=True)) + m
        cls_ids = lax.broadcasted_iota(jnp.int32, logits.shape, 1)
        onehot = (cls_ids == labels_ref[...]).astype(jnp.float32)
        true_logit = jnp.sum(onehot * logits, axis=1, keepdims=True)
        loss_ref[...] = lse - true_logit


@partial(jax.jit, static_argnames=("training",))
def audio_model_forward(hidden, wp, bp, wc, bc, labels, dropout_key,
                        training=True):
    """hidden: (B, T, 768) -- stand-in for wav2vec2 last_hidden_state.
       labels: (B,) int32, dropout_key: jax PRNG key."""
    B, T, D = hidden.shape
    C = wc.shape[1]

    # Batch tile: full-dim block for tiny B (satisfies the (8,128) rule because
    # block == array dim); 8 otherwise so v7x's two TCs both get blocks as soon
    # as B > 8.  Time tile: single block for small T, else 512 (f32 block
    # ~12.6 MB -> ~25 MB double-buffered, fits v7x's 64 MiB VMEM).
    TILE_B = B if B <= 8 else 8
    TILE_T = T if T <= 512 else 512
    grid_b = pl.cdiv(B, TILE_B)
    grid_t = pl.cdiv(T, TILE_T)
    B_pad = grid_b * TILE_B
    C_PAD = _round_up(max(C, 128), 128)   # lane-dense classifier output

    # ---- dropout mask (training: keep-mask / (1-p); eval: identity) ----
    if training:
        keep = jax.random.bernoulli(dropout_key, 1.0 - DROPOUT_P, (B, D))
        drop_scale = keep.astype(jnp.float32) / (1.0 - DROPOUT_P)
    else:
        drop_scale = jnp.ones((B, D), jnp.float32)

    # Only tiny tensors are padded; the (B, T, D) hidden stream is fed as-is
    # (no wrapper-side cast or pad of the big tensor -> no extra HBM round trip).
    wp_f = wp.astype(jnp.float32)
    bp_f = bp.astype(jnp.float32)
    wc_pad = jnp.pad(wc.astype(jnp.float32), ((0, 0), (0, C_PAD - C)))
    bc_pad = jnp.pad(bc.astype(jnp.float32), ((0, 0), (0, C_PAD - C)),
                     constant_values=-1e30)
    drop_pad = jnp.pad(drop_scale, ((0, B_pad - B), (0, 0)), constant_values=1.0)
    labels_pad = jnp.pad(labels.reshape(B, 1).astype(jnp.int32),
                         ((0, B_pad - B), (0, 0)))

    kernel = partial(audio_head_kernel, seq_len=T, tile_t=TILE_T, inv_t=1.0 / T)

    # Explicit VMEM budget: hidden double-buffer + ~16 MB for weights/outputs/
    # scratch.  Worst case (TILE_B=8, TILE_T=512, f32) ~41 MB: above v5e's
    # 16 MiB default scoped limit, below v7x's 64 MiB physical VMEM.
    hidden_block_bytes = TILE_B * TILE_T * D * hidden.dtype.itemsize
    vmem_limit = int(2 * hidden_block_bytes) + (16 << 20)

    pred_pad, loss_vec = pl.pallas_call(
        kernel,
        out_shape=(jax.ShapeDtypeStruct((B_pad, C_PAD), jnp.float32),
                   jax.ShapeDtypeStruct((B_pad, 1), jnp.float32)),
        grid=(grid_b, grid_t),
        in_specs=[
            pl.BlockSpec((TILE_B, TILE_T, D), lambda b, t: (b, t, 0)),  # hidden
            pl.BlockSpec((D, D),              lambda b, t: (0, 0)),     # Wp
            pl.BlockSpec((1, D),              lambda b, t: (0, 0)),     # bp
            pl.BlockSpec((D, C_PAD),          lambda b, t: (0, 0)),     # Wc
            pl.BlockSpec((1, C_PAD),          lambda b, t: (0, 0)),     # bc
            pl.BlockSpec((TILE_B, D),         lambda b, t: (b, 0)),     # dropout scale
            pl.BlockSpec((TILE_B, 1),         lambda b, t: (b, 0)),     # labels
        ],
        out_specs=(
            pl.BlockSpec((TILE_B, C_PAD), lambda b, t: (b, 0)),         # logits
            pl.BlockSpec((TILE_B, 1),     lambda b, t: (b, 0)),         # per-sample loss
        ),
        scratch_shapes=[pltpu.VMEM((TILE_B, D), jnp.float32)],          # pooled sum
        compiler_params=pltpu.CompilerParams(
            dimension_semantics=("parallel", "arbitrary"),
            vmem_limit_bytes=vmem_limit),
    )(hidden, wp_f, bp_f, wc_pad, bc_pad, drop_pad, labels_pad)

    prediction = pred_pad[:B, :C]
    loss = jnp.mean(loss_vec[:B, 0])      # CrossEntropyLoss default: batch mean
    return prediction, loss


def init_linear(key, fan_in, fan_out):
    """PyTorch nn.Linear default init: U(-1/sqrt(fan_in), 1/sqrt(fan_in))."""
    kw, kb = jax.random.split(key)
    bound = 1.0 / math.sqrt(fan_in)
    w = jax.random.uniform(kw, (fan_in, fan_out), jnp.float32, -bound, bound)
    b = jax.random.uniform(kb, (1, fan_out), jnp.float32, -bound, bound)
    return w, b


def reference_forward(hidden, wp, bp, wc, bc, labels):
    """Pure-JAX reference of the module math (dropout disabled / eval mode)."""
    proj = jnp.einsum("btd,de->bte", hidden, wp) + bp[0]
    pooled = proj.mean(axis=1)
    logits = pooled @ wc + bc[0]
    lse = jax.scipy.special.logsumexp(logits, axis=1)
    true_logit = jnp.take_along_axis(logits, labels[:, None], axis=1)[:, 0]
    return logits, jnp.mean(lse - true_logit)


if __name__ == "__main__":
    key = jax.random.PRNGKey(0)
    k_hidden, k_proj, k_cls, k_lab, k_drop = jax.random.split(key, 5)

    B, T, D, C = 2, 8, FEATURE_DIM, NUM_CLASS

    # Stand-in for wav2vec2(wav, attention_mask=mask)['last_hidden_state']
    hidden = jax.random.normal(k_hidden, (B, T, D), jnp.float32)

    wp, bp = init_linear(k_proj, D, D)   # projector
    wc, bc = init_linear(k_cls, D, C)    # classifier
    labels = jax.random.randint(k_lab, (B,), 0, C, jnp.int32)

    # Training-mode forward (dropout active), matching AudioModel.forward.
    pred, loss = audio_model_forward(hidden, wp, bp, wc, bc, labels, k_drop,
                                     training=True)
    jax.block_until_ready((pred, loss))
    assert pred.shape == (B, C) and pred.dtype == jnp.float32
    assert loss.shape == () and bool(jnp.isfinite(loss))

    # Self-check on a longer sequence that exercises time tiling + the ragged
    # tail mask (eval mode so dropout is the identity and results are exact).
    T2 = 1040   # grid_t = 3, last block has only 16 valid timesteps
    hidden2 = jax.random.normal(k_hidden, (B, T2, D), jnp.float32)
    pred2, loss2 = audio_model_forward(hidden2, wp, bp, wc, bc, labels, k_drop,
                                       training=False)
    ref_pred, ref_loss = reference_forward(hidden2, wp, bp, wc, bc, labels)
    jax.block_until_ready((pred2, loss2))
    assert bool(jnp.allclose(pred2, ref_pred, atol=5e-2, rtol=5e-2))
    assert bool(jnp.allclose(loss2, ref_loss, atol=5e-2, rtol=5e-2))

    print("KERNEL_OK")
</pallas_src>

<mosaic_0001>
module attributes {stable_mosaic.version = 11 : i64} {
  func.func @audio_head_kernel(%arg0: i32, %arg1: i32, %arg2: memref<2x8x768xf32, #tpu.memory_space<vmem>>, %arg3: memref<768x768xf32, #tpu.memory_space<vmem>>, %arg4: memref<1x768xf32, #tpu.memory_space<vmem>>, %arg5: memref<768x128xf32, #tpu.memory_space<vmem>>, %arg6: memref<1x128xf32, #tpu.memory_space<vmem>>, %arg7: memref<2x768xf32, #tpu.memory_space<vmem>>, %arg8: memref<2x1xi32, #tpu.memory_space<vmem>>, %arg9: memref<2x128xf32, #tpu.memory_space<vmem>>, %arg10: memref<2x1xf32, #tpu.memory_space<vmem>>, %arg11: memref<2x768xf32, #tpu.memory_space<vmem>>) attributes {dimension_semantics = [#tpu.dimension_semantics<parallel>, #tpu.dimension_semantics<arbitrary>], iteration_bounds = array<i64: 1, 1>, scalar_prefetch = 0 : i64, scratch_operands = 1 : i64, tpu.core_type = #tpu.core_type<tc>, window_params = [{transform_indices = @transform_0, window_bounds = array<i64: 2, 8, 768>}, {pipeline_mode = #tpu.pipeline_mode<synchronous>, transform_indices = @transform_1, window_bounds = array<i64: 768, 768>}, {pipeline_mode = #tpu.pipeline_mode<synchronous>, transform_indices = @transform_2, window_bounds = array<i64: 1, 768>}, {pipeline_mode = #tpu.pipeline_mode<synchronous>, transform_indices = @transform_3, window_bounds = array<i64: 768, 128>}, {pipeline_mode = #tpu.pipeline_mode<synchronous>, transform_indices = @transform_4, window_bounds = array<i64: 1, 128>}, {transform_indices = @transform_5, window_bounds = array<i64: 2, 768>}, {transform_indices = @transform_6, window_bounds = array<i64: 2, 1>}, {transform_indices = @transform_7, window_bounds = array<i64: 2, 128>}, {transform_indices = @transform_8, window_bounds = array<i64: 2, 1>}]} {
    %c0_i32 = arith.constant 0 : i32
    %0 = arith.cmpi eq, %arg1, %c0_i32 : i32
    %1 = arith.extui %0 : i1 to i32
    %c0_i32_0 = arith.constant 0 : i32
    %2 = arith.cmpi ne, %1, %c0_i32_0 : i32
    scf.if %2 {
      %cst_9 = arith.constant 0.000000e+00 : f32
      %11 = vector.broadcast %cst_9 : f32 to vector<2x768xf32>
      %c0_10 = arith.constant 0 : index
      %c0_11 = arith.constant 0 : index
      %12 = vector.load %arg11[%c0_10, %c0_11] : memref<2x768xf32, #tpu.memory_space<vmem>>, vector<2x768xf32>
      tpu.vector_store %arg11[%c0_10, %c0_11], %11 {strides = array<i32>} : memref<2x768xf32, #tpu.memory_space<vmem>>, vector<2x768xf32>,
    } else {
    }
    %c0 = arith.constant 0 : index
    %c0_1 = arith.constant 0 : index
    %c0_2 = arith.constant 0 : index
    %3 = vector.load %arg2[%c0, %c0_1, %c0_2] : memref<2x8x768xf32, #tpu.memory_space<vmem>>, vector<2x8x768xf32>
    %c0_3 = arith.constant 0 : index
    %c0_4 = arith.constant 0 : index
    %4 = vector.load %arg11[%c0_3, %c0_4] : memref<2x768xf32, #tpu.memory_space<vmem>>, vector<2x768xf32>
    %cst = arith.constant dense<0.000000e+00> : vector<2x768xf32>
    %5 = vector.multi_reduction <add>, %3, %cst [1] : vector<2x8x768xf32> to vector<2x768xf32>
    %6 = arith.addf %4, %5 : vector<2x768xf32>
    %c0_5 = arith.constant 0 : index
    %c0_6 = arith.constant 0 : index
    %7 = vector.load %arg11[%c0_5, %c0_6] : memref<2x768xf32, #tpu.memory_space<vmem>>, vector<2x768xf32>
    tpu.vector_store %arg11[%c0_5, %c0_6], %6 {strides = array<i32>} : memref<2x768xf32, #tpu.memory_space<vmem>>, vector<2x768xf32>,
    %c0_i32_7 = arith.constant 0 : i32
    %8 = arith.cmpi eq, %arg1, %c0_i32_7 : i32
    %9 = arith.extui %8 : i1 to i32
    %c0_i32_8 = arith.constant 0 : i32
    %10 = arith.cmpi ne, %9, %c0_i32_8 : i32
    scf.if %10 {
      %c0_9 = arith.constant 0 : index
      %c0_10 = arith.constant 0 : index
      %11 = vector.load %arg11[%c0_9, %c0_10] : memref<2x768xf32, #tpu.memory_space<vmem>>, vector<2x768xf32>
      %cst_11 = arith.constant 1.250000e-01 : f32
      %12 = vector.broadcast %cst_11 : f32 to vector<2x768xf32>
      %13 = arith.mulf %11, %12 : vector<2x768xf32>
      %c0_12 = arith.constant 0 : index
      %c0_13 = arith.constant 0 : index
      %14 = vector.load %arg3[%c0_12, %c0_13] : memref<768x768xf32, #tpu.memory_space<vmem>>, vector<768x768xf32>
      %cst_14 = arith.constant dense<0.000000e+00> : vector<2x768xf32>
      %15 = tpu.matmul %13, %14, %cst_14 {dimension_numbers = #tpu.dot_dimension_numbers<[1], [0], [0], [1], [0, 0, 1, 1], [], []>} : vector<2x768xf32>, vector<768x768xf32>, vector<2x768xf32> -> vector<2x768xf32>
      %c0_15 = arith.constant 0 : index
      %c0_16 = arith.constant 0 : index
      %16 = vector.load %arg4[%c0_15, %c0_16] : memref<1x768xf32, #tpu.memory_space<vmem>>, vector<1x768xf32>
      %17 = vector.broadcast %16 : vector<1x768xf32> to vector<2x768xf32>
      %18 = arith.addf %15, %17 : vector<2x768xf32>
      %c0_17 = arith.constant 0 : index
      %c0_18 = arith.constant 0 : index
      %19 = vector.load %arg7[%c0_17, %c0_18] : memref<2x768xf32, #tpu.memory_space<vmem>>, vector<2x768xf32>
      %20 = arith.mulf %18, %19 : vector<2x768xf32>
      %c0_19 = arith.constant 0 : index
      %c0_20 = arith.constant 0 : index
      %21 = vector.load %arg5[%c0_19, %c0_20] : memref<768x128xf32, #tpu.memory_space<vmem>>, vector<768x128xf32>
      %cst_21 = arith.constant dense<0.000000e+00> : vector<2x128xf32>
      %22 = tpu.matmul %20, %21, %cst_21 {dimension_numbers = #tpu.dot_dimension_numbers<[1], [0], [0], [1], [0, 0, 1, 1], [], []>} : vector<2x768xf32>, vector<768x128xf32>, vector<2x128xf32> -> vector<2x128xf32>
      %c0_22 = arith.constant 0 : index
      %c0_23 = arith.constant 0 : index
      %23 = vector.load %arg6[%c0_22, %c0_23] : memref<1x128xf32, #tpu.memory_space<vmem>>, vector<1x128xf32>
      %24 = vector.broadcast %23 : vector<1x128xf32> to vector<2x128xf32>
      %25 = arith.addf %22, %24 : vector<2x128xf32>
      %c0_24 = arith.constant 0 : index
      %c0_25 = arith.constant 0 : index
      %26 = vector.load %arg9[%c0_24, %c0_25] : memref<2x128xf32, #tpu.memory_space<vmem>>, vector<2x128xf32>
      tpu.vector_store %arg9[%c0_24, %c0_25], %25 {strides = array<i32>} : memref<2x128xf32, #tpu.memory_space<vmem>>, vector<2x128xf32>,
      %cst_26 = arith.constant dense<0xFF800000> : vector<2xf32>
      %27 = vector.multi_reduction <maximumf>, %25, %cst_26 [1] : vector<2x128xf32> to vector<2xf32>
      %28 = vector.shape_cast %27 : vector<2xf32> to vector<2x1xf32>
      %29 = vector.broadcast %28 : vector<2x1xf32> to vector<2x128xf32>
      %30 = arith.subf %25, %29 : vector<2x128xf32>
      %31 = math.exp %30 : vector<2x128xf32>
      %cst_27 = arith.constant dense<0.000000e+00> : vector<2xf32>
      %32 = vector.multi_reduction <add>, %31, %cst_27 [1] : vector<2x128xf32> to vector<2xf32>
      %33 = vector.shape_cast %32 : vector<2xf32> to vector<2x1xf32>
      %34 = math.log %33 : vector<2x1xf32>
      %35 = arith.addf %34, %28 : vector<2x1xf32>
      %36 = tpu.iota {dimensions = array<i32: 1>} : vector<2x128xi32>
      %c0_28 = arith.constant 0 : index
      %c0_29 = arith.constant 0 : index
      %37 = vector.load %arg8[%c0_28, %c0_29] : memref<2x1xi32, #tpu.memory_space<vmem>>, vector<2x1xi32>
      %38 = vector.broadcast %37 : vector<2x1xi32> to vector<2x128xi32>
      %39 = arith.cmpi eq, %36, %38 : vector<2x128xi32>
      %40 = arith.extui %39 : vector<2x128xi1> to vector<2x128xi32>
      %41 = arith.sitofp %40 : vector<2x128xi32> to vector<2x128xf32>
      %42 = arith.mulf %41, %25 : vector<2x128xf32>
      %cst_30 = arith.constant dense<0.000000e+00> : vector<2xf32>
      %43 = vector.multi_reduction <add>, %42, %cst_30 [1] : vector<2x128xf32> to vector<2xf32>
      %44 = vector.shape_cast %43 : vector<2xf32> to vector<2x1xf32>
      %45 = arith.subf %35, %44 : vector<2x1xf32>
      %c0_31 = arith.constant 0 : index
      %c0_32 = arith.constant 0 : index
      %46 = vector.load %arg10[%c0_31, %c0_32] : memref<2x1xf32, #tpu.memory_space<vmem>>, vector<2x1xf32>
      tpu.vector_store %arg10[%c0_31, %c0_32], %45 {strides = array<i32>} : memref<2x1xf32, #tpu.memory_space<vmem>>, vector<2x1xf32>,
    } else {
    }
    return
  }
  func.func @transform_0(%arg0: i32, %arg1: i32) -> (i32, i32, i32) {
    %c0_i32 = arith.constant 0 : i32
    %c0_i32_0 = arith.constant 0 : i32
    return %arg0, %arg1, %c0_i32 : i32, i32, i32
  }
  func.func @transform_1(%arg0: i32, %arg1: i32) -> (i32, i32) {
    %c0_i32 = arith.constant 0 : i32
    %c0_i32_0 = arith.constant 0 : i32
    %c0_i32_1 = arith.constant 0 : i32
    return %c0_i32, %c0_i32_0 : i32, i32
  }
  func.func @transform_2(%arg0: i32, %arg1: i32) -> (i32, i32) {
    %c0_i32 = arith.constant 0 : i32
    %c0_i32_0 = arith.constant 0 : i32
    %c0_i32_1 = arith.constant 0 : i32
    return %c0_i32, %c0_i32_0 : i32, i32
  }
  func.func @transform_3(%arg0: i32, %arg1: i32) -> (i32, i32) {
    %c0_i32 = arith.constant 0 : i32
    %c0_i32_0 = arith.constant 0 : i32
    %c0_i32_1 = arith.constant 0 : i32
    return %c0_i32, %c0_i32_0 : i32, i32
  }
  func.func @transform_4(%arg0: i32, %arg1: i32) -> (i32, i32) {
    %c0_i32 = arith.constant 0 : i32
    %c0_i32_0 = arith.constant 0 : i32
    %c0_i32_1 = arith.constant 0 : i32
    return %c0_i32, %c0_i32_0 : i32, i32
  }
  func.func @transform_5(%arg0: i32, %arg1: i32) -> (i32, i32) {
    %c0_i32 = arith.constant 0 : i32
    %c0_i32_0 = arith.constant 0 : i32
    return %arg0, %c0_i32 : i32, i32
  }
  func.func @transform_6(%arg0: i32, %arg1: i32) -> (i32, i32) {
    %c0_i32 = arith.constant 0 : i32
    %c0_i32_0 = arith.constant 0 : i32
    return %arg0, %c0_i32 : i32, i32
  }
  func.func @transform_7(%arg0: i32, %arg1: i32) -> (i32, i32) {
    %c0_i32 = arith.constant 0 : i32
    %c0_i32_0 = arith.constant 0 : i32
    return %arg0, %c0_i32 : i32, i32
  }
  func.func @transform_8(%arg0: i32, %arg1: i32) -> (i32, i32) {
    %c0_i32 = arith.constant 0 : i32
    %c0_i32_0 = arith.constant 0 : i32
    return %arg0, %c0_i32 : i32, i32
  }
}

</mosaic_0001>

<llo_original>
// kernel: audio_model_forward.1
$region0: #{audio_model_forward.1}
  #allocation0 [shape = 'u32[]', space=smem, size = 0x4, offset = 0x4, fixed_abs, tag = 'smem constant byte address 0x4 - core index']
  #allocation1 [shape = 'u32[72,128]{1,0:T(1,128)}', space=vmem, size = 0x9000, scoped, tag = 'internal scratch']
  #allocation2 [shape = 'f32[2,768]{1,0:T(2,128)}', space=vmem, size = 0x1800, scoped, tag = 'scratch operand']
  %s0 = inlined_call_operand.hbm [shape: f32[2,8,768], index: 0, kind: input, shape index: {}]
  %s1 = inlined_call_operand.hbm [shape: f32[768,768], index: 1, kind: input, shape index: {}]
  %s2 = inlined_call_operand.hbm [shape: f32[1,768], index: 2, kind: input, shape index: {}]
  %s3 = inlined_call_operand.vmem [shape: f32[768,128], index: 3, kind: input, shape index: {}]
  %s4 = inlined_call_operand.vmem [shape: f32[1,128], index: 4, kind: input, shape index: {}]
  %s5 = inlined_call_operand.vmem [shape: f32[2,768], index: 5, kind: input, shape index: {}]
  %s6 = inlined_call_operand.vmem [shape: s32[2,1], index: 6, kind: input, shape index: {}]
  %s7 = inlined_call_operand.hbm [shape: f32[2,128], index: 7, kind: output, shape index: {0}]
  %s8 = inlined_call_operand.vmem [shape: f32[2,1], index: 8, kind: output, shape index: {1}]
  %9 = xla_tuple %s7, %s8
  %s10 = sld [smem:[#allocation0]]
  $region66: #{audio_model_forward.1} parent=0
    _
  %s12 = ssub.s32 1, %s10
  %s13 = scalar_select 0, %s12, %s10
  $region1: #{audio_model_forward.1} parent=0
    #allocation3 [shape = 'u8[49152]{0}', space=vmem, size = 0xc000, scoped, tag = 'input window, operand 0, single buffered']
    #allocation4 [shape = 's32[1]{0}', space=sflag, size = 0x4, scoped, tag = 'scoped memory for audio_model_forward.1']
    #allocation5 [shape = 's32[1]{0}', space=sflag, size = 0x4, scoped, tag = 'scoped memory for audio_model_forward.1']
    #allocation6 [shape = 'u8[2359296]{0}', space=vmem, size = 0x240000, scoped, tag = 'input window, operand 1, single buffered']
    #allocation7 [shape = 's32[1]{0}', space=sflag, size = 0x4, scoped, tag = 'scoped memory for audio_model_forward.1']
    #allocation8 [shape = 'u8[3072]{0}', space=vmem, size = 0xc00, scoped, tag = 'input window, operand 2, single buffered']
    #allocation9 [shape = 'u8[1024]{0}', space=vmem, size = 0x400, scoped, tag = 'output window, operand 0, single buffered']
    %14 = vsyncpa [#allocation4], 0
    %15 = vsyncpa [#allocation7], 0
    %16 = vsyncpa [#allocation5], 0
    // Predicated region
    $region2: #{audio_model_forward.1} parent=1 // pred_check
      _
    $region3: #{audio_model_forward.1} parent=1 // pred_check_branch
      %18 = sbr.rel (0) target = $region5
    $region4: #{audio_model_forward.1} parent=1 // pred_region
      %20 = vsyncadd [#allocation4], 0
      %s21 = sshll.u32 %s0, 4
      %s22 = int_to_ptr.hbm [resolvable:$true] %s21
      %s23 = sshll.u32 [#allocation3], 4
      %s24 = int_to_ptr.vmem [resolvable:$true] %s23
      %29 = dma.hbm_to_vmem [thread:$0]  %s22, 1536, %s24, [#allocation4], 768, 768, 48
    $region5: #{audio_model_forward.1} parent=1 // pred_fallthru
      _
    // Predicated region
    $region6: #{audio_model_forward.1} parent=1 // pred_check
      _
    $region7: #{audio_model_forward.1} parent=1 // pred_check_branch
      %31 = sbr.rel (0) target = $region9
    $region8: #{audio_model_forward.1} parent=1 // pred_region
      %33 = vsyncadd [#allocation7], 0
      %s34 = sshll.u32 %s1, 4
      %s35 = int_to_ptr.hbm [resolvable:$true] %s34
      %s36 = sshll.u32 [#allocation6], 4
      %s37 = int_to_ptr.vmem [resolvable:$true] %s36
      %42 = dma.hbm_to_vmem [thread:$0]  %s35, 73728, %s37, [#allocation7], 768, 768, 48
    $region9: #{audio_model_forward.1} parent=1 // pred_fallthru
      _
    // Predicated region
    $region10: #{audio_model_forward.1} parent=1 // pred_check
      _
    $region11: #{audio_model_forward.1} parent=1 // pred_check_branch
      %44 = sbr.rel (0) target = $region13
    $region12: #{audio_model_forward.1} parent=1 // pred_region
      %46 = vsyncadd [#allocation7], 0
      %s48 = sshll.u32 %s2, 4
      %s49 = int_to_ptr.hbm [resolvable:$true] %s48
      %s50 = sshll.u32 [#allocation8], 4
      %s51 = int_to_ptr.vmem [resolvable:$true] %s50
      %53 = dma.hbm_to_vmem [thread:$0]  %s49, 96, %s51, [#allocation7]
    $region13: #{audio_model_forward.1} parent=1 // pred_fallthru
      _
    // Predicated region
    $region14: #{audio_model_forward.1} parent=1 // pred_check
      _
    $region15: #{audio_model_forward.1} parent=1 // pred_check_branch
      %55 = sbr.rel (0) target = $region17
    $region16: #{audio_model_forward.1} parent=1 // pred_region
      _
    $region17: #{audio_model_forward.1} parent=1 // pred_fallthru
      _
    // Predicated region
    $region18: #{audio_model_forward.1} parent=1 // pred_check
      _
    $region19: #{audio_model_forward.1} parent=1 // pred_check_branch
      %57 = sbr.rel (0) target = $region21
    $region20: #{audio_model_forward.1} parent=1 // pred_region
      _
    $region21: #{audio_model_forward.1} parent=1 // pred_fallthru
      _
    // Predicated region
    $region22: #{audio_model_forward.1} parent=1 // pred_check
      _
    $region23: #{audio_model_forward.1} parent=1 // pred_check_branch
      %59 = sbr.rel (0) target = $region25
    $region24: #{audio_model_forward.1} parent=1 // pred_region
      _
    $region25: #{audio_model_forward.1} parent=1 // pred_fallthru
      _
    // Predicated region
    $region26: #{audio_model_forward.1} parent=1 // pred_check
      _
    $region27: #{audio_model_forward.1} parent=1 // pred_check_branch
      %61 = sbr.rel (0) target = $region29
    $region28: #{audio_model_forward.1} parent=1 // pred_region
      _
    $region29: #{audio_model_forward.1} parent=1 // pred_fallthru
      _
    // Predicated region
    $region30: #{audio_model_forward.1} parent=1 // pred_check
      _
    $region31: #{audio_model_forward.1} parent=1 // pred_check_branch
      %63 = sbr.rel (0) target = $region33
    $region32: #{audio_model_forward.1} parent=1 // pred_region
      %65 = dma.done [#allocation4], 1536
    $region33: #{audio_model_forward.1} parent=1 // pred_fallthru
      _
    // Predicated region
    $region34: #{audio_model_forward.1} parent=1 // pred_check
      _
    $region35: #{audio_model_forward.1} parent=1 // pred_check_branch
      %67 = sbr.rel (0) target = $region37
    $region36: #{audio_model_forward.1} parent=1 // pred_region
      %69 = dma.done [#allocation7], 73728
    $region37: #{audio_model_forward.1} parent=1 // pred_fallthru
      _
    // Predicated region
    $region38: #{audio_model_forward.1} parent=1 // pred_check
      _
    $region39: #{audio_model_forward.1} parent=1 // pred_check_branch
      %71 = sbr.rel (0) target = $region41
    $region40: #{audio_model_forward.1} parent=1 // pred_region
      %73 = dma.done [#allocation7], 96
    $region41: #{audio_model_forward.1} parent=1 // pred_fallthru
      _
    %p74 = scmp.eq.s32.totalorder 0, 0
    // Predicated region
    $region42: #{audio_model_forward.1} parent=1 // pred_check
      %p75 = pneg %p74
    $region43: #{audio_model_forward.1} parent=1 // pred_check_branch
      %77 = sbr.rel (%p75) target = $region45
    $region44: #{audio_model_forward.1} parent=1 // pred_region
      %78 = vst [vmem:[#allocation2] sm:$0xff] 0.0
      %79 = vst [vmem:[#allocation2 + $0x8] sm:$0xf] 0.0
    $region45: #{audio_model_forward.1} parent=1 // pred_fallthru
      _
    %v80 = vld [vmem:[#allocation3] sm:$0xff]
    %v81 = vld [vmem:[#allocation3 + $0x8] sm:$0xff]
    %v82 = vld [vmem:[#allocation3 + $0x10] sm:$0xff]
    %v83 = vld [vmem:[#allocation3 + $0x18] sm:$0xff]
    %v84 = vld [vmem:[#allocation3 + $0x20] sm:$0xff]
    %v85 = vld [vmem:[#allocation3 + $0x28] sm:$0xff]
    %v86 = vld [vmem:[#allocation3 + $0x30] sm:$0xff]
    %v87 = vld [vmem:[#allocation3 + $0x38] sm:$0xff]
    %v88 = vld [vmem:[#allocation3 + $0x40] sm:$0xff]
    %v89 = vld [vmem:[#allocation3 + $0x48] sm:$0xff]
    %v90 = vld [vmem:[#allocation3 + $0x50] sm:$0xff]
    %v91 = vld [vmem:[#allocation3 + $0x58] sm:$0xff]
    %v92 = vld [vmem:[#allocation2] sm:$0xff]
    %v93 = vld [vmem:[#allocation2 + $0x8] sm:$0xf]
    %v94 = vrot.slane %v80, 4
    %v95 = vadd.f32 %v80, %v94
    %v96 = vrot.slane %v95, 2
    %v97 = vadd.f32 %v95, %v96
    %v98 = vrot.slane %v97, 1
    %v99 = vadd.f32 %v97, %v98
    %v100 = vrot.slane %v81, 4
    %v101 = vadd.f32 %v81, %v100
    %v102 = vrot.slane %v101, 2
    %v103 = vadd.f32 %v101, %v102
    %v104 = vrot.slane %v103, 1
    %v105 = vadd.f32 %v103, %v104
    %v106 = vrot.slane %v82, 4
    %v107 = vadd.f32 %v82, %v106
    %v108 = vrot.slane %v107, 2
    %v109 = vadd.f32 %v107, %v108
    %v110 = vrot.slane %v109, 1
    %v111 = vadd.f32 %v109, %v110
    %v112 = vrot.slane %v83, 4
    %v113 = vadd.f32 %v83, %v112
    %v114 = vrot.slane %v113, 2
    %v115 = vadd.f32 %v113, %v114
    %v116 = vrot.slane %v115, 1
    %v117 = vadd.f32 %v115, %v116
    %v118 = vrot.slane %v84, 4
    %v119 = vadd.f32 %v84, %v118
    %v120 = vrot.slane %v119, 2
    %v121 = vadd.f32 %v119, %v120
    %v122 = vrot.slane %v121, 1
    %v123 = vadd.f32 %v121, %v122
    %v124 = vrot.slane %v85, 4
    %v125 = vadd.f32 %v85, %v124
    %v126 = vrot.slane %v125, 2
    %v127 = vadd.f32 %v125, %v126
    %v128 = vrot.slane %v127, 1
    %v129 = vadd.f32 %v127, %v128
    %v130 = vrot.slane %v86, 4
    %v131 = vadd.f32 %v86, %v130
    %v132 = vrot.slane %v131, 2
    %v133 = vadd.f32 %v131, %v132
    %v134 = vrot.slane %v133, 1
    %v135 = vadd.f32 %v133, %v134
    %v136 = vrot.slane %v87, 4
    %v137 = vadd.f32 %v87, %v136
    %v138 = vrot.slane %v137, 2
    %v139 = vadd.f32 %v137, %v138
    %v140 = vrot.slane %v139, 1
    %v141 = vadd.f32 %v139, %v140
    %v142 = vrot.slane %v88, 4
    %v143 = vadd.f32 %v88, %v142
    %v144 = vrot.slane %v143, 2
    %v145 = vadd.f32 %v143, %v144
    %v146 = vrot.slane %v145, 1
    %v147 = vadd.f32 %v145, %v146
    %v148 = vrot.slane %v89, 4
    %v149 = vadd.f32 %v89, %v148
    %v150 = vrot.slane %v149, 2
    %v151 = vadd.f32 %v149, %v150
    %v152 = vrot.slane %v151, 1
    %v153 = vadd.f32 %v151, %v152
    %v154 = vrot.slane %v90, 4
    %v155 = vadd.f32 %v90, %v154
    %v156 = vrot.slane %v155, 2
    %v157 = vadd.f32 %v155, %v156
    %v158 = vrot.slane %v157, 1
    %v159 = vadd.f32 %v157, %v158
    %v160 = vrot.slane %v91, 4
    %v161 = vadd.f32 %v91, %v160
    %v162 = vrot.slane %v161, 2
    %v163 = vadd.f32 %v161, %v162
    %v164 = vrot.slane %v163, 1
    %v165 = vadd.f32 %v163, %v164
    %v178 = vrot.slane %v105, 6
    %v179 = vrot.slane %v111, 4
    %v180 = vrot.slane %v117, 2
    %v181 = vrot.slane %v129, 6
    %v182 = vrot.slane %v141, 6
    %v183 = vrot.slane %v147, 4
    %v184 = vrot.slane %v153, 2
    %v185 = vrot.slane %v165, 6
    %vm186 = vcmask 1041408
    %v187 = vsel %vm186, %v99, %v178
    %vm188 = vcmask 1045508
    %v189 = vsel %vm188, %v179, %v180
    %vm190 = vcmask 1043456
    %v191 = vsel %vm190, %v187, %v189
    %v192 = vsel %vm186, %v123, %v181
    %v193 = vsel %vm186, %v135, %v182
    %v194 = vsel %vm188, %v183, %v184
    %v195 = vsel %vm190, %v193, %v194
    %v196 = vsel %vm186, %v159, %v185
    %vm197 = vcmask 1044484
    %v198 = vsel %vm197, %v191, %v191
    %vm199 = vcmask 1046534
    %v200 = vsel %vm199, %v191, %v198
    %v201 = vrot.slane %v195, 7
    %vm202 = vcmask 1041409
    %v203 = vsel %vm202, %v201, %v200
    %vm204 = vcmask 1043459
    %v205 = vsel %vm204, %v201, %v203
    %vm206 = vcmask 1045509
    %v207 = vsel %vm206, %v201, %v205
    %vm208 = vcmask 1047559
    %v209 = vsel %vm208, %v201, %v207
    %v210 = vsel %vm197, %v192, %v192
    %v211 = vsel %vm199, %v192, %v210
    %v212 = vrot.slane %v196, 7
    %v213 = vsel %vm202, %v212, %v211
    %v214 = vsel %vm204, %v212, %v213
    %v215 = vsel %vm206, %v212, %v214
    %v216 = vsel %vm208, %v212, %v215
    %v219 = vadd.f32 %v92, %v209
    %v220 = vadd.f32 %v93, %v216
    %221 = vst [vmem:[#allocation2] sm:$0xff] %v219
    %222 = vst [vmem:[#allocation2 + $0x8] sm:$0xf] %v220
    // Predicated region
    $region46: #{audio_model_forward.1} parent=1 // pred_check
      %p223 = pneg %p74
    $region47: #{audio_model_forward.1} parent=1 // pred_check_branch
      %225 = sbr.rel (%p223) target = $region49
    $region48: #{audio_model_forward.1} parent=1 // pred_region
      %v226 = vld [vmem:[#allocation2] sm:$0xff]
      %v227 = vld [vmem:[#allocation2 + $0x8] sm:$0xf]
      %v228 = vmul.f32 %v226, 0.125
      %v229 = vmul.f32 %v227, 0.125
      %v230 = vld [vmem:[#allocation6] sm:$0xff]
      %v231 = vld [vmem:[#allocation6 + $0x8] sm:$0xff]
      %v232 = vld [vmem:[#allocation6 + $0x10] sm:$0xff]
      %v233 = vld [vmem:[#allocation6 + $0x18] sm:$0xff]
      %v234 = vld [vmem:[#allocation6 + $0x20] sm:$0xff]
      %v235 = vld [vmem:[#allocation6 + $0x28] sm:$0xff]
      %v236 = vld [vmem:[#allocation6 + $0x30] sm:$0xff]
      %v237 = vld [vmem:[#allocation6 + $0x38] sm:$0xff]
      %v238 = vld [vmem:[#allocation6 + $0x40] sm:$0xff]
      %v239 = vld [vmem:[#allocation6 + $0x48] sm:$0xff]
      %v240 = vld [vmem:[#allocation6 + $0x50] sm:$0xff]
      %v241 = vld [vmem:[#allocation6 + $0x58] sm:$0xff]
      %v242 = vld [vmem:[#allocation6 + $0x60] sm:$0xff]
      %v243 = vld [vmem:[#allocation6 + $0x68] sm:$0xff]
      %v244 = vld [vmem:[#allocation6 + $0x70] sm:$0xff]
      %v245 = vld [vmem:[#allocation6 + $0x78] sm:$0xff]
      %v246 = vld [vmem:[#allocation6 + $0x80] sm:$0xff]
      %v247 = vld [vmem:[#allocation6 + $0x88] sm:$0xff]
      %v248 = vld [vmem:[#allocation6 + $0x90] sm:$0xff]
      %v249 = vld [vmem:[#allocation6 + $0x98] sm:$0xff]
      %v250 = vld [vmem:[#allocation6 + $0xa0] sm:$0xff]
      %v251 = vld [vmem:[#allocation6 + $0xa8] sm:$0xff]
      %v252 = vld [vmem:[#allocation6 + $0xb0] sm:$0xff]
      %v253 = vld [vmem:[#allocation6 + $0xb8] sm:$0xff]
      %v254 = vld [vmem:[#allocation6 + $0xc0] sm:$0xff]
      %v255 = vld [vmem:[#allocation6 + $0xc8] sm:$0xff]
      %v256 = vld [vmem:[#allocation6 + $0xd0] sm:$0xff]
      %v257 = vld [vmem:[#allocation6 + $0xd8] sm:$0xff]
      %v258 = vld [vmem:[#allocation6 + $0xe0] sm:$0xff]
      %v259 = vld [vmem:[#allocation6 + $0xe8] sm:$0xff]
      %v260 = vld [vmem:[#allocation6 + $0xf0] sm:$0xff]
      %v261 = vld [vmem:[#allocation6 + $0xf8] sm:$0xff]
      %v262 = vld [vmem:[#allocation6 + $0x100] sm:$0xff]
      %v263 = vld [vmem:[#allocation6 + $0x108] sm:$0xff]
      %v264 = vld [vmem:[#allocation6 + $0x110] sm:$0xff]
      %v265 = vld [vmem:[#allocation6 + $0x118] sm:$0xff]
      %v266 = vld [vmem:[#allocation6 + $0x120] sm:$0xff]
      %v267 = vld [vmem:[#allocation6 + $0x128] sm:$0xff]
      %v268 = vld [vmem:[#allocation6 + $0x130] sm:$0xff]
      %v269 = vld [vmem:[#allocation6 + $0x138] sm:$0xff]
      %v270 = vld [vmem:[#allocation6 + $0x140] sm:$0xff]
      %v271 = vld [vmem:[#allocation6 + $0x148] sm:$0xff]
      %v272 = vld [vmem:[#allocation6 + $0x150] sm:$0xff]
      %v273 = vld [vmem:[#allocation6 + $0x158] sm:$0xff]
      %v274 = vld [vmem:[#allocation6 + $0x160] sm:$0xff]
      %v275 = vld [vmem:[#allocation6 + $0x168] sm:$0xff]
      %v276 = vld [vmem:[#allocation6 + $0x170] sm:$0xff]
      %v277 = vld [vmem:[#allocation6 + $0x178] sm:$0xff]
      %v278 = vld [vmem:[#allocation6 + $0x180] sm:$0xff]
      %v279 = vld [vmem:[#allocation6 + $0x188] sm:$0xff]
      %v280 = vld [vmem:[#allocation6 + $0x190] sm:$0xff]
      %v281 = vld [vmem:[#allocation6 + $0x198] sm:$0xff]
      %v282 = vld [vmem:[#allocation6 + $0x1a0] sm:$0xff]
      %v283 = vld [vmem:[#allocation6 + $0x1a8] sm:$0xff]
      %v284 = vld [vmem:[#allocation6 + $0x1b0] sm:$0xff]
      %v285 = vld [vmem:[#allocation6 + $0x1b8] sm:$0xff]
      %v286 = vld [vmem:[#allocation6 + $0x1c0] sm:$0xff]
      %v287 = vld [vmem:[#allocation6 + $0x1c8] sm:$0xff]
      %v288 = vld [vmem:[#allocation6 + $0x1d0] sm:$0xff]
      %v289 = vld [vmem:[#allocation6 + $0x1d8] sm:$0xff]
      %v290 = vld [vmem:[#allocation6 + $0x1e0] sm:$0xff]
      %v291 = vld [vmem:[#allocation6 + $0x1e8] sm:$0xff]
      %v292 = vld [vmem:[#allocation6 + $0x1f0] sm:$0xff]
      %v293 = vld [vmem:[#allocation6 + $0x1f8] sm:$0xff]
      %v294 = vld [vmem:[#allocation6 + $0x200] sm:$0xff]
      %v295 = vld [vmem:[#allocation6 + $0x208] sm:$0xff]
      %v296 = vld [vmem:[#allocation6 + $0x210] sm:$0xff]
      %v297 = vld [vmem:[#allocation6 + $0x218] sm:$0xff]
      %v298 = vld [vmem:[#allocation6 + $0x220] sm:$0xff]
      %v299 = vld [vmem:[#allocation6 + $0x228] sm:$0xff]
      %v300 = vld [vmem:[#allocation6 + $0x230] sm:$0xff]
      %v301 = vld [vmem:[#allocation6 + $0x238] sm:$0xff]
      %v302 = vld [vmem:[#allocation6 + $0x240] sm:$0xff]
      %v303 = vld [vmem:[#allocation6 + $0x248] sm:$0xff]
      %v304 = vld [vmem:[#allocation6 + $0x250] sm:$0xff]
      %v305 = vld [vmem:[#allocation6 + $0x258] sm:$0xff]
      %v306 = vld [vmem:[#allocation6 + $0x260] sm:$0xff]
      %v307 = vld [vmem:[#allocation6 + $0x268] sm:$0xff]
      %v308 = vld [vmem:[#allocation6 + $0x270] sm:$0xff]
      %v309 = vld [vmem:[#allocation6 + $0x278] sm:$0xff]
      %v310 = vld [vmem:[#allocation6 + $0x280] sm:$0xff]
      %v311 = vld [vmem:[#allocation6 + $0x288] sm:$0xff]
      %v312 = vld [vmem:[#allocation6 + $0x290] sm:$0xff]
      %v313 = vld [vmem:[#allocation6 + $0x298] sm:$0xff]
      %v314 = vld [vmem:[#allocation6 + $0x2a0] sm:$0xff]
      %v315 = vld [vmem:[#allocation6 + $0x2a8] sm:$0xff]
      %v316 = vld [vmem:[#allocation6 + $0x2b0] sm:$0xff]
      %v317 = vld [vmem:[#allocation6 + $0x2b8] sm:$0xff]
      %v318 = vld [vmem:[#allocation6 + $0x2c0] sm:$0xff]
      %v319 = vld [vmem:[#allocation6 + $0x2c8] sm:$0xff]
      %v320 = vld [vmem:[#allocation6 + $0x2d0] sm:$0xff]
      %v321 = vld [vmem:[#allocation6 + $0x2d8] sm:$0xff]
      %v322 = vld [vmem:[#allocation6 + $0x2e0] sm:$0xff]
      %v323 = vld [vmem:[#allocation6 + $0x2e8] sm:$0xff]
      %v324 = vld [vmem:[#allocation6 + $0x2f0] sm:$0xff]
      %v325 = vld [vmem:[#allocation6 + $0x2f8] sm:$0xff]
      %v326 = vld [vmem:[#allocation6 + $0x300] sm:$0xff]
      %v327 = vld [vmem:[#allocation6 + $0x308] sm:$0xff]
      %v328 = vld [vmem:[#allocation6 + $0x310] sm:$0xff]
      %v329 = vld [vmem:[#allocation6 + $0x318] sm:$0xff]
      %v330 = vld [vmem:[#allocation6 + $0x320] sm:$0xff]
      %v331 = vld [vmem:[#allocation6 + $0x328] sm:$0xff]
      %v332 = vld [vmem:[#allocation6 + $0x330] sm:$0xff]
      %v333 = vld [vmem:[#allocation6 + $0x338] sm:$0xff]
      %v334 = vld [vmem:[#allocation6 + $0x340] sm:$0xff]
      %v335 = vld [vmem:[#allocation6 + $0x348] sm:$0xff]
      %v336 = vld [vmem:[#allocation6 + $0x350] sm:$0xff]
      %v337 = vld [vmem:[#allocation6 + $0x358] sm:$0xff]
      %v338 = vld [vmem:[#allocation6 + $0x360] sm:$0xff]
      %v339 = vld [vmem:[#allocation6 + $0x368] sm:$0xff]
      %v340 = vld [vmem:[#allocation6 + $0x370] sm:$0xff]
      %v341 = vld [vmem:[#allocation6 + $0x378] sm:$0xff]
      %v342 = vld [vmem:[#allocation6 + $0x380] sm:$0xff]
      %v343 = vld [vmem:[#allocation6 + $0x388] sm:$0xff]
      %v344 = vld [vmem:[#allocation6 + $0x390] sm:$0xff]
      %v345 = vld [vmem:[#allocation6 + $0x398] sm:$0xff]
      %v346 = vld [vmem:[#allocation6 + $0x3a0] sm:$0xff]
      %v347 = vld [vmem:[#allocation6 + $0x3a8] sm:$0xff]
      %v348 = vld [vmem:[#allocation6 + $0x3b0] sm:$0xff]
      %v349 = vld [vmem:[#allocation6 + $0x3b8] sm:$0xff]
      %v350 = vld [vmem:[#allocation6 + $0x3c0] sm:$0xff]
      %v351 = vld [vmem:[#allocation6 + $0x3c8] sm:$0xff]
      %v352 = vld [vmem:[#allocation6 + $0x3d0] sm:$0xff]
      %v353 = vld [vmem:[#allocation6 + $0x3d8] sm:$0xff]
      %v354 = vld [vmem:[#allocation6 + $0x3e0] sm:$0xff]
      %v355 = vld [vmem:[#allocation6 + $0x3e8] sm:$0xff]
      %v356 = vld [vmem:[#allocation6 + $0x3f0] sm:$0xff]
      %v357 = vld [vmem:[#allocation6 + $0x3f8] sm:$0xff]
      %v358 = vld [vmem:[#allocation6 + $0x400] sm:$0xff]
      %v359 = vld [vmem:[#allocation6 + $0x408] sm:$0xff]
      %v360 = vld [vmem:[#allocation6 + $0x410] sm:$0xff]
      %v361 = vld [vmem:[#allocation6 + $0x418] sm:$0xff]
      %v362 = vld [vmem:[#allocation6 + $0x420] sm:$0xff]
      %v363 = vld [vmem:[#allocation6 + $0x428] sm:$0xff]
      %v364 = vld [vmem:[#allocation6 + $0x430] sm:$0xff]
      %v365 = vld [vmem:[#allocation6 + $0x438] sm:$0xff]
      %v366 = vld [vmem:[#allocation6 + $0x440] sm:$0xff]
      %v367 = vld [vmem:[#allocation6 + $0x448] sm:$0xff]
      %v368 = vld [vmem:[#allocation6 + $0x450] sm:$0xff]
      %v369 = vld [vmem:[#allocation6 + $0x458] sm:$0xff]
      %v370 = vld [vmem:[#allocation6 + $0x460] sm:$0xff]
      %v371 = vld [vmem:[#allocation6 + $0x468] sm:$0xff]
      %v372 = vld [vmem:[#allocation6 + $0x470] sm:$0xff]
      %v373 = vld [vmem:[#allocation6 + $0x478] sm:$0xff]
      %v374 = vld [vmem:[#allocation6 + $0x480] sm:$0xff]
      %v375 = vld [vmem:[#allocation6 + $0x488] sm:$0xff]
      %v376 = vld [vmem:[#allocation6 + $0x490] sm:$0xff]
      %v377 = vld [vmem:[#allocation6 + $0x498] sm:$0xff]
      %v378 = vld [vmem:[#allocation6 + $0x4a0] sm:$0xff]
      %v379 = vld [vmem:[#allocation6 + $0x4a8] sm:$0xff]
      %v380 = vld [vmem:[#allocation6 + $0x4b0] sm:$0xff]
      %v381 = vld [vmem:[#allocation6 + $0x4b8] sm:$0xff]
      %v382 = vld [vmem:[#allocation6 + $0x4c0] sm:$0xff]
      %v383 = vld [vmem:[#allocation6 + $0x4c8] sm:$0xff]
      %v384 = vld [vmem:[#allocation6 + $0x4d0] sm:$0xff]
      %v385 = vld [vmem:[#allocation6 + $0x4d8] sm:$0xff]
      %v386 = vld [vmem:[#allocation6 + $0x4e0] sm:$0xff]
      %v387 = vld [vmem:[#allocation6 + $0x4e8] sm:$0xff]
      %v388 = vld [vmem:[#allocation6 + $0x4f0] sm:$0xff]
      %v389 = vld [vmem:[#allocation6 + $0x4f8] sm:$0xff]
      %v390 = vld [vmem:[#allocation6 + $0x500] sm:$0xff]
      %v391 = vld [vmem:[#allocation6 + $0x508] sm:$0xff]
      %v392 = vld [vmem:[#allocation6 + $0x510] sm:$0xff]
      %v393 = vld [vmem:[#allocation6 + $0x518] sm:$0xff]
      %v394 = vld [vmem:[#allocation6 + $0x520] sm:$0xff]
      %v395 = vld [vmem:[#allocation6 + $0x528] sm:$0xff]
      %v396 = vld [vmem:[#allocation6 + $0x530] sm:$0xff]
      %v397 = vld [vmem:[#allocation6 + $0x538] sm:$0xff]
      %v398 = vld [vmem:[#allocation6 + $0x540] sm:$0xff]
      %v399 = vld [vmem:[#allocation6 + $0x548] sm:$0xff]
      %v400 = vld [vmem:[#allocation6 + $0x550] sm:$0xff]
      %v401 = vld [vmem:[#allocation6 + $0x558] sm:$0xff]
      %v402 = vld [vmem:[#allocation6 + $0x560] sm:$0xff]
      %v403 = vld [vmem:[#allocation6 + $0x568] sm:$0xff]
      %v404 = vld [vmem:[#allocation6 + $0x570] sm:$0xff]
      %v405 = vld [vmem:[#allocation6 + $0x578] sm:$0xff]
      %v406 = vld [vmem:[#allocation6 + $0x580] sm:$0xff]
      %v407 = vld [vmem:[#allocation6 + $0x588] sm:$0xff]
      %v408 = vld [vmem:[#allocation6 + $0x590] sm:$0xff]
      %v409 = vld [vmem:[#allocation6 + $0x598] sm:$0xff]
      %v410 = vld [vmem:[#allocation6 + $0x5a0] sm:$0xff]
      %v411 = vld [vmem:[#allocation6 + $0x5a8] sm:$0xff]
      %v412 = vld [vmem:[#allocation6 + $0x5b0] sm:$0xff]
      %v413 = vld [vmem:[#allocation6 + $0x5b8] sm:$0xff]
      %v414 = vld [vmem:[#allocation6 + $0x5c0] sm:$0xff]
      %v415 = vld [vmem:[#allocation6 + $0x5c8] sm:$0xff]
      %v416 = vld [vmem:[#allocation6 + $0x5d0] sm:$0xff]
      %v417 = vld [vmem:[#allocation6 + $0x5d8] sm:$0xff]
      %v418 = vld [vmem:[#allocation6 + $0x5e0] sm:$0xff]
      %v419 = vld [vmem:[#allocation6 + $0x5e8] sm:$0xff]
      %v420 = vld [vmem:[#allocation6 + $0x5f0] sm:$0xff]
      %v421 = vld [vmem:[#allocation6 + $0x5f8] sm:$0xff]
      %v422 = vld [vmem:[#allocation6 + $0x600] sm:$0xff]
      %v423 = vld [vmem:[#allocation6 + $0x608] sm:$0xff]
      %v424 = vld [vmem:[#allocation6 + $0x610] sm:$0xff]
      %v425 = vld [vmem:[#allocation6 + $0x618] sm:$0xff]
      %v426 = vld [vmem:[#allocation6 + $0x620] sm:$0xff]
      %v427 = vld [vmem:[#allocation6 + $0x628] sm:$0xff]
      %v428 = vld [vmem:[#allocation6 + $0x630] sm:$0xff]
      %v429 = vld [vmem:[#allocation6 + $0x638] sm:$0xff]
      %v430 = vld [vmem:[#allocation6 + $0x640] sm:$0xff]
      %v431 = vld [vmem:[#allocation6 + $0x648] sm:$0xff]
      %v432 = vld [vmem:[#allocation6 + $0x650] sm:$0xff]
      %v433 = vld [vmem:[#allocation6 + $0x658] sm:$0xff]
      %v434 = vld [vmem:[#allocation6 + $0x660] sm:$0xff]
      %v435 = vld [vmem:[#allocation6 + $0x668] sm:$0xff]
      %v436 = vld [vmem:[#allocation6 + $0x670] sm:$0xff]
      %v437 = vld [vmem:[#allocation6 + $0x678] sm:$0xff]
      %v438 = vld [vmem:[#allocation6 + $0x680] sm:$0xff]
      %v439 = vld [vmem:[#allocation6 + $0x688] sm:$0xff]
      %v440 = vld [vmem:[#allocation6 + $0x690] sm:$0xff]
      %v441 = vld [vmem:[#allocation6 + $0x698] sm:$0xff]
      %v442 = vld [vmem:[#allocation6 + $0x6a0] sm:$0xff]
      %v443 = vld [vmem:[#allocation6 + $0x6a8] sm:$0xff]
      %v444 = vld [vmem:[#allocation6 + $0x6b0] sm:$0xff]
      %v445 = vld [vmem:[#allocation6 + $0x6b8] sm:$0xff]
      %v446 = vld [vmem:[#allocation6 + $0x6c0] sm:$0xff]
      %v447 = vld [vmem:[#allocation6 + $0x6c8] sm:$0xff]
      %v448 = vld [vmem:[#allocation6 + $0x6d0] sm:$0xff]
      %v449 = vld [vmem:[#allocation6 + $0x6d8] sm:$0xff]
      %v450 = vld [vmem:[#allocation6 + $0x6e0] sm:$0xff]
      %v451 = vld [vmem:[#allocation6 + $0x6e8] sm:$0xff]
      %v452 = vld [vmem:[#allocation6 + $0x6f0] sm:$0xff]
      %v453 = vld [vmem:[#allocation6 + $0x6f8] sm:$0xff]
      %v454 = vld [vmem:[#allocation6 + $0x700] sm:$0xff]
      %v455 = vld [vmem:[#allocation6 + $0x708] sm:$0xff]
      %v456 = vld [vmem:[#allocation6 + $0x710] sm:$0xff]
      %v457 = vld [vmem:[#allocation6 + $0x718] sm:$0xff]
      %v458 = vld [vmem:[#allocation6 + $0x720] sm:$0xff]
      %v459 = vld [vmem:[#allocation6 + $0x728] sm:$0xff]
      %v460 = vld [vmem:[#allocation6 + $0x730] sm:$0xff]
      %v461 = vld [vmem:[#allocation6 + $0x738] sm:$0xff]
      %v462 = vld [vmem:[#allocation6 + $0x740] sm:$0xff]
      %v463 = vld [vmem:[#allocation6 + $0x748] sm:$0xff]
      %v464 = vld [vmem:[#allocation6 + $0x750] sm:$0xff]
      %v465 = vld [vmem:[#allocation6 + $0x758] sm:$0xff]
      %v466 = vld [vmem:[#allocation6 + $0x760] sm:$0xff]
      %v467 = vld [vmem:[#allocation6 + $0x768] sm:$0xff]
      %v468 = vld [vmem:[#allocation6 + $0x770] sm:$0xff]
      %v469 = vld [vmem:[#allocation6 + $0x778] sm:$0xff]
      %v470 = vld [vmem:[#allocation6 + $0x780] sm:$0xff]
      %v471 = vld [vmem:[#allocation6 + $0x788] sm:$0xff]
      %v472 = vld [vmem:[#allocation6 + $0x790] sm:$0xff]
      %v473 = vld [vmem:[#allocation6 + $0x798] sm:$0xff]
      %v474 = vld [vmem:[#allocation6 + $0x7a0] sm:$0xff]
      %v475 = vld [vmem:[#allocation6 + $0x7a8] sm:$0xff]
      %v476 = vld [vmem:[#allocation6 + $0x7b0] sm:$0xff]
      %v477 = vld [vmem:[#allocation6 + $0x7b8] sm:$0xff]
      %v478 = vld [vmem:[#allocation6 + $0x7c0] sm:$0xff]
      %v479 = vld [vmem:[#allocation6 + $0x7c8] sm:$0xff]
      %v480 = vld [vmem:[#allocation6 + $0x7d0] sm:$0xff]
      %v481 = vld [vmem:[#allocation6 + $0x7d8] sm:$0xff]
      %v482 = vld [vmem:[#allocation6 + $0x7e0] sm:$0xff]
      %v483 = vld [vmem:[#allocation6 + $0x7e8] sm:$0xff]
      %v484 = vld [vmem:[#allocation6 + $0x7f0] sm:$0xff]
      %v485 = vld [vmem:[#allocation6 + $0x7f8] sm:$0xff]
      %v486 = vld [vmem:[#allocation6 + $0x800] sm:$0xff]
      %v487 = vld [vmem:[#allocation6 + $0x808] sm:$0xff]
      %v488 = vld [vmem:[#allocation6 + $0x810] sm:$0xff]
      %v489 = vld [vmem:[#allocation6 + $0x818] sm:$0xff]
      %v490 = vld [vmem:[#allocation6 + $0x820] sm:$0xff]
      %v491 = vld [vmem:[#allocation6 + $0x828] sm:$0xff]
      %v492 = vld [vmem:[#allocation6 + $0x830] sm:$0xff]
      %v493 = vld [vmem:[#allocation6 + $0x838] sm:$0xff]
      %v494 = vld [vmem:[#allocation6 + $0x840] sm:$0xff]
      %v495 = vld [vmem:[#allocation6 + $0x848] sm:$0xff]
      %v496 = vld [vmem:[#allocation6 + $0x850] sm:$0xff]
      %v497 = vld [vmem:[#allocation6 + $0x858] sm:$0xff]
      %v498 = vld [vmem:[#allocation6 + $0x860] sm:$0xff]
      %v499 = vld [vmem:[#allocation6 + $0x868] sm:$0xff]
      %v500 = vld [vmem:[#allocation6 + $0x870] sm:$0xff]
      %v501 = vld [vmem:[#allocation6 + $0x878] sm:$0xff]
      %v502 = vld [vmem:[#allocation6 + $0x880] sm:$0xff]
      %v503 = vld [vmem:[#allocation6 + $0x888] sm:$0xff]
      %v504 = vld [vmem:[#allocation6 + $0x890] sm:$0xff]
      %v505 = vld [vmem:[#allocation6 + $0x898] sm:$0xff]
      %v506 = vld [vmem:[#allocation6 + $0x8a0] sm:$0xff]
      %v507 = vld [vmem:[#allocation6 + $0x8a8] sm:$0xff]
      %v508 = vld [vmem:[#allocation6 + $0x8b0] sm:$0xff]
      %v509 = vld [vmem:[#allocation6 + $0x8b8] sm:$0xff]
      %v510 = vld [vmem:[#allocation6 + $0x8c0] sm:$0xff]
      %v511 = vld [vmem:[#allocation6 + $0x8c8] sm:$0xff]
      %v512 = vld [vmem:[#allocation6 + $0x8d0] sm:$0xff]
      %v513 = vld [vmem:[#allocation6 + $0x8d8] sm:$0xff]
      %v514 = vld [vmem:[#allocation6 + $0x8e0] sm:$0xff]
      %v515 = vld [vmem:[#allocation6 + $0x8e8] sm:$0xff]
      %v516 = vld [vmem:[#allocation6 + $0x8f0] sm:$0xff]
      %v517 = vld [vmem:[#allocation6 + $0x8f8] sm:$0xff]
      %v518 = vld [vmem:[#allocation6 + $0x900] sm:$0xff]
      %v519 = vld [vmem:[#allocation6 + $0x908] sm:$0xff]
      %v520 = vld [vmem:[#allocation6 + $0x910] sm:$0xff]
      %v521 = vld [vmem:[#allocation6 + $0x918] sm:$0xff]
      %v522 = vld [vmem:[#allocation6 + $0x920] sm:$0xff]
      %v523 = vld [vmem:[#allocation6 + $0x928] sm:$0xff]
      %v524 = vld [vmem:[#allocation6 + $0x930] sm:$0xff]
      %v525 = vld [vmem:[#allocation6 + $0x938] sm:$0xff]
      %v526 = vld [vmem:[#allocation6 + $0x940] sm:$0xff]
      %v527 = vld [vmem:[#allocation6 + $0x948] sm:$0xff]
      %v528 = vld [vmem:[#allocation6 + $0x950] sm:$0xff]
      %v529 = vld [vmem:[#allocation6 + $0x958] sm:$0xff]
      %v530 = vld [vmem:[#allocation6 + $0x960] sm:$0xff]
      %v531 = vld [vmem:[#allocation6 + $0x968] sm:$0xff]
      %v532 = vld [vmem:[#allocation6 + $0x970] sm:$0xff]
      %v533 = vld [vmem:[#allocation6 + $0x978] sm:$0xff]
      %v534 = vld [vmem:[#allocation6 + $0x980] sm:$0xff]
      %v535 = vld [vmem:[#allocation6 + $0x988] sm:$0xff]
      %v536 = vld [vmem:[#allocation6 + $0x990] sm:$0xff]
      %v537 = vld [vmem:[#allocation6 + $0x998] sm:$0xff]
      %v538 = vld [vmem:[#allocation6 + $0x9a0] sm:$0xff]
      %v539 = vld [vmem:[#allocation6 + $0x9a8] sm:$0xff]
      %v540 = vld [vmem:[#allocation6 + $0x9b0] sm:$0xff]
      %v541 = vld [vmem:[#allocation6 + $0x9b8] sm:$0xff]
      %v542 = vld [vmem:[#allocation6 + $0x9c0] sm:$0xff]
      %v543 = vld [vmem:[#allocation6 + $0x9c8] sm:$0xff]
      %v544 = vld [vmem:[#allocation6 + $0x9d0] sm:$0xff]
      %v545 = vld [vmem:[#allocation6 + $0x9d8] sm:$0xff]
      %v546 = vld [vmem:[#allocation6 + $0x9e0] sm:$0xff]
      %v547 = vld [vmem:[#allocation6 + $0x9e8] sm:$0xff]
      %v548 = vld [vmem:[#allocation6 + $0x9f0] sm:$0xff]
      %v549 = vld [vmem:[#allocation6 + $0x9f8] sm:$0xff]
      %v550 = vld [vmem:[#allocation6 + $0xa00] sm:$0xff]
      %v551 = vld [vmem:[#allocation6 + $0xa08] sm:$0xff]
      %v552 = vld [vmem:[#allocation6 + $0xa10] sm:$0xff]
      %v553 = vld [vmem:[#allocation6 + $0xa18] sm:$0xff]
      %v554 = vld [vmem:[#allocation6 + $0xa20] sm:$0xff]
      %v555 = vld [vmem:[#allocation6 + $0xa28] sm:$0xff]
      %v556 = vld [vmem:[#allocation6 + $0xa30] sm:$0xff]
      %v557 = vld [vmem:[#allocation6 + $0xa38] sm:$0xff]
      %v558 = vld [vmem:[#allocation6 + $0xa40] sm:$0xff]
      %v559 = vld [vmem:[#allocation6 + $0xa48] sm:$0xff]
      %v560 = vld [vmem:[#allocation6 + $0xa50] sm:$0xff]
      %v561 = vld [vmem:[#allocation6 + $0xa58] sm:$0xff]
      %v562 = vld [vmem:[#allocation6 + $0xa60] sm:$0xff]
      %v563 = vld [vmem:[#allocation6 + $0xa68] sm:$0xff]
      %v564 = vld [vmem:[#allocation6 + $0xa70] sm:$0xff]
      %v565 = vld [vmem:[#allocation6 + $0xa78] sm:$0xff]
      %v566 = vld [vmem:[#allocation6 + $0xa80] sm:$0xff]
      %v567 = vld [vmem:[#allocation6 + $0xa88] sm:$0xff]
      %v568 = vld [vmem:[#allocation6 + $0xa90] sm:$0xff]
      %v569 = vld [vmem:[#allocation6 + $0xa98] sm:$0xff]
      %v570 = vld [vmem:[#allocation6 + $0xaa0] sm:$0xff]
      %v571 = vld [vmem:[#allocation6 + $0xaa8] sm:$0xff]
      %v572 = vld [vmem:[#allocation6 + $0xab0] sm:$0xff]
      %v573 = vld [vmem:[#allocation6 + $0xab8] sm:$0xff]
      %v574 = vld [vmem:[#allocation6 + $0xac0] sm:$0xff]
      %v575 = vld [vmem:[#allocation6 + $0xac8] sm:$0xff]
      %v576 = vld [vmem:[#allocation6 + $0xad0] sm:$0xff]
      %v577 = vld [vmem:[#allocation6 + $0xad8] sm:$0xff]
      %v578 = vld [vmem:[#allocation6 + $0xae0] sm:$0xff]
      %v579 = vld [vmem:[#allocation6 + $0xae8] sm:$0xff]
      %v580 = vld [vmem:[#allocation6 + $0xaf0] sm:$0xff]
      %v581 = vld [vmem:[#allocation6 + $0xaf8] sm:$0xff]
      %v582 = vld [vmem:[#allocation6 + $0xb00] sm:$0xff]
      %v583 = vld [vmem:[#allocation6 + $0xb08] sm:$0xff]
      %v584 = vld [vmem:[#allocation6 + $0xb10] sm:$0xff]
      %v585 = vld [vmem:[#allocation6 + $0xb18] sm:$0xff]
      %v586 = vld [vmem:[#allocation6 + $0xb20] sm:$0xff]
      %v587 = vld [vmem:[#allocation6 + $0xb28] sm:$0xff]
      %v588 = vld [vmem:[#allocation6 + $0xb30] sm:$0xff]
      %v589 = vld [vmem:[#allocation6 + $0xb38] sm:$0xff]
      %v590 = vld [vmem:[#allocation6 + $0xb40] sm:$0xff]
      %v591 = vld [vmem:[#allocation6 + $0xb48] sm:$0xff]
      %v592 = vld [vmem:[#allocation6 + $0xb50] sm:$0xff]
      %v593 = vld [vmem:[#allocation6 + $0xb58] sm:$0xff]
      %v594 = vld [vmem:[#allocation6 + $0xb60] sm:$0xff]
      %v595 = vld [vmem:[#allocation6 + $0xb68] sm:$0xff]
      %v596 = vld [vmem:[#allocation6 + $0xb70] sm:$0xff]
      %v597 = vld [vmem:[#allocation6 + $0xb78] sm:$0xff]
      %v598 = vld [vmem:[#allocation6 + $0xb80] sm:$0xff]
      %v599 = vld [vmem:[#allocation6 + $0xb88] sm:$0xff]
      %v600 = vld [vmem:[#allocation6 + $0xb90] sm:$0xff]
      %v601 = vld [vmem:[#allocation6 + $0xb98] sm:$0xff]
      %v602 = vld [vmem:[#allocation6 + $0xba0] sm:$0xff]
      %v603 = vld [vmem:[#allocation6 + $0xba8] sm:$0xff]
      %v604 = vld [vmem:[#allocation6 + $0xbb0] sm:$0xff]
      %v605 = vld [vmem:[#allocation6 + $0xbb8] sm:$0xff]
      %v606 = vld [vmem:[#allocation6 + $0xbc0] sm:$0xff]
      %v607 = vld [vmem:[#allocation6 + $0xbc8] sm:$0xff]
      %v608 = vld [vmem:[#allocation6 + $0xbd0] sm:$0xff]
      %v609 = vld [vmem:[#allocation6 + $0xbd8] sm:$0xff]
      %v610 = vld [vmem:[#allocation6 + $0xbe0] sm:$0xff]
      %v611 = vld [vmem:[#allocation6 + $0xbe8] sm:$0xff]
      %v612 = vld [vmem:[#allocation6 + $0xbf0] sm:$0xff]
      %v613 = vld [vmem:[#allocation6 + $0xbf8] sm:$0xff]
      %v614 = vld [vmem:[#allocation6 + $0xc00] sm:$0xff]
      %v615 = vld [vmem:[#allocation6 + $0xc08] sm:$0xff]
      %v616 = vld [vmem:[#allocation6 + $0xc10] sm:$0xff]
      %v617 = vld [vmem:[#allocation6 + $0xc18] sm:$0xff]
      %v618 = vld [vmem:[#allocation6 + $0xc20] sm:$0xff]
      %v619 = vld [vmem:[#allocation6 + $0xc28] sm:$0xff]
      %v620 = vld [vmem:[#allocation6 + $0xc30] sm:$0xff]
      %v621 = vld [vmem:[#allocation6 + $0xc38] sm:$0xff]
      %v622 = vld [vmem:[#allocation6 + $0xc40] sm:$0xff]
      %v623 = vld [vmem:[#allocation6 + $0xc48] sm:$0xff]
      %v624 = vld [vmem:[#allocation6 + $0xc50] sm:$0xff]
      %v625 = vld [vmem:[#allocation6 + $0xc58] sm:$0xff]
      %v626 = vld [vmem:[#allocation6 + $0xc60] sm:$0xff]
      %v627 = vld [vmem:[#allocation6 + $0xc68] sm:$0xff]
      %v628 = vld [vmem:[#allocation6 + $0xc70] sm:$0xff]
      %v629 = vld [vmem:[#allocation6 + $0xc78] sm:$0xff]
      %v630 = vld [vmem:[#allocation6 + $0xc80] sm:$0xff]
      %v631 = vld [vmem:[#allocation6 + $0xc88] sm:$0xff]
      %v632 = vld [vmem:[#allocation6 + $0xc90] sm:$0xff]
      %v633 = vld [vmem:[#allocation6 + $0xc98] sm:$0xff]
      %v634 = vld [vmem:[#allocation6 + $0xca0] sm:$0xff]
      %v635 = vld [vmem:[#allocation6 + $0xca8] sm:$0xff]
      %v636 = vld [vmem:[#allocation6 + $0xcb0] sm:$0xff]
      %v637 = vld [vmem:[#allocation6 + $0xcb8] sm:$0xff]
      %v638 = vld [vmem:[#allocation6 + $0xcc0] sm:$0xff]
      %v639 = vld [vmem:[#allocation6 + $0xcc8] sm:$0xff]
      %v640 = vld [vmem:[#allocation6 + $0xcd0] sm:$0xff]
      %v641 = vld [vmem:[#allocation6 + $0xcd8] sm:$0xff]
      %v642 = vld [vmem:[#allocation6 + $0xce0] sm:$0xff]
      %v643 = vld [vmem:[#allocation6 + $0xce8] sm:$0xff]
      %v644 = vld [vmem:[#allocation6 + $0xcf0] sm:$0xff]
      %v645 = vld [vmem:[#allocation6 + $0xcf8] sm:$0xff]
      %v646 = vld [vmem:[#allocation6 + $0xd00] sm:$0xff]
      %v647 = vld [vmem:[#allocation6 + $0xd08] sm:$0xff]
      %v648 = vld [vmem:[#allocation6 + $0xd10] sm:$0xff]
      %v649 = vld [vmem:[#allocation6 + $0xd18] sm:$0xff]
      %v650 = vld [vmem:[#allocation6 + $0xd20] sm:$0xff]
      %v651 = vld [vmem:[#allocation6 + $0xd28] sm:$0xff]
      %v652 = vld [vmem:[#allocation6 + $0xd30] sm:$0xff]
      %v653 = vld [vmem:[#allocation6 + $0xd38] sm:$0xff]
      %v654 = vld [vmem:[#allocation6 + $0xd40] sm:$0xff]
      %v655 = vld [vmem:[#allocation6 + $0xd48] sm:$0xff]
      %v656 = vld [vmem:[#allocation6 + $0xd50] sm:$0xff]
      %v657 = vld [vmem:[#allocation6 + $0xd58] sm:$0xff]
      %v658 = vld [vmem:[#allocation6 + $0xd60] sm:$0xff]
      %v659 = vld [vmem:[#allocation6 + $0xd68] sm:$0xff]
      %v660 = vld [vmem:[#allocation6 + $0xd70] sm:$0xff]
      %v661 = vld [vmem:[#allocation6 + $0xd78] sm:$0xff]
      %v662 = vld [vmem:[#allocation6 + $0xd80] sm:$0xff]
      %v663 = vld [vmem:[#allocation6 + $0xd88] sm:$0xff]
      %v664 = vld [vmem:[#allocation6 + $0xd90] sm:$0xff]
      %v665 = vld [vmem:[#allocation6 + $0xd98] sm:$0xff]
      %v666 = vld [vmem:[#allocation6 + $0xda0] sm:$0xff]
      %v667 = vld [vmem:[#allocation6 + $0xda8] sm:$0xff]
      %v668 = vld [vmem:[#allocation6 + $0xdb0] sm:$0xff]
      %v669 = vld [vmem:[#allocation6 + $0xdb8] sm:$0xff]
      %v670 = vld [vmem:[#allocation6 + $0xdc0] sm:$0xff]
      %v671 = vld [vmem:[#allocation6 + $0xdc8] sm:$0xff]
      %v672 = vld [vmem:[#allocation6 + $0xdd0] sm:$0xff]
      %v673 = vld [vmem:[#allocation6 + $0xdd8] sm:$0xff]
      %v674 = vld [vmem:[#allocation6 + $0xde0] sm:$0xff]
      %v675 = vld [vmem:[#allocation6 + $0xde8] sm:$0xff]
      %v676 = vld [vmem:[#allocation6 + $0xdf0] sm:$0xff]
      %v677 = vld [vmem:[#allocation6 + $0xdf8] sm:$0xff]
      %v678 = vld [vmem:[#allocation6 + $0xe00] sm:$0xff]
      %v679 = vld [vmem:[#allocation6 + $0xe08] sm:$0xff]
      %v680 = vld [vmem:[#allocation6 + $0xe10] sm:$0xff]
      %v681 = vld [vmem:[#allocation6 + $0xe18] sm:$0xff]
      %v682 = vld [vmem:[#allocation6 + $0xe20] sm:$0xff]
      %v683 = vld [vmem:[#allocation6 + $0xe28] sm:$0xff]
      %v684 = vld [vmem:[#allocation6 + $0xe30] sm:$0xff]
      %v685 = vld [vmem:[#allocation6 + $0xe38] sm:$0xff]
      %v686 = vld [vmem:[#allocation6 + $0xe40] sm:$0xff]
      %v687 = vld [vmem:[#allocation6 + $0xe48] sm:$0xff]
      %v688 = vld [vmem:[#allocation6 + $0xe50] sm:$0xff]
      %v689 = vld [vmem:[#allocation6 + $0xe58] sm:$0xff]
      %v690 = vld [vmem:[#allocation6 + $0xe60] sm:$0xff]
      %v691 = vld [vmem:[#allocation6 + $0xe68] sm:$0xff]
      %v692 = vld [vmem:[#allocation6 + $0xe70] sm:$0xff]
      %v693 = vld [vmem:[#allocation6 + $0xe78] sm:$0xff]
      %v694 = vld [vmem:[#allocation6 + $0xe80] sm:$0xff]
      %v695 = vld [vmem:[#allocation6 + $0xe88] sm:$0xff]
      %v696 = vld [vmem:[#allocation6 + $0xe90] sm:$0xff]
      %v697 = vld [vmem:[#allocation6 + $0xe98] sm:$0xff]
      %v698 = vld [vmem:[#allocation6 + $0xea0] sm:$0xff]
      %v699 = vld [vmem:[#allocation6 + $0xea8] sm:$0xff]
      %v700 = vld [vmem:[#allocation6 + $0xeb0] sm:$0xff]
      %v701 = vld [vmem:[#allocation6 + $0xeb8] sm:$0xff]
      %v702 = vld [vmem:[#allocation6 + $0xec0] sm:$0xff]
      %v703 = vld [vmem:[#allocation6 + $0xec8] sm:$0xff]
      %v704 = vld [vmem:[#allocation6 + $0xed0] sm:$0xff]
      %v705 = vld [vmem:[#allocation6 + $0xed8] sm:$0xff]
      %v706 = vld [vmem:[#allocation6 + $0xee0] sm:$0xff]
      %v707 = vld [vmem:[#allocation6 + $0xee8] sm:$0xff]
      %v708 = vld [vmem:[#allocation6 + $0xef0] sm:$0xff]
      %v709 = vld [vmem:[#allocation6 + $0xef8] sm:$0xff]
      %v710 = vld [vmem:[#allocation6 + $0xf00] sm:$0xff]
      %v711 = vld [vmem:[#allocation6 + $0xf08] sm:$0xff]
      %v712 = vld [vmem:[#allocation6 + $0xf10] sm:$0xff]
      %v713 = vld [vmem:[#allocation6 + $0xf18] sm:$0xff]
      %v714 = vld [vmem:[#allocation6 + $0xf20] sm:$0xff]
      %v715 = vld [vmem:[#allocation6 + $0xf28] sm:$0xff]
      %v716 = vld [vmem:[#allocation6 + $0xf30] sm:$0xff]
      %v717 = vld [vmem:[#allocation6 + $0xf38] sm:$0xff]
      %v718 = vld [vmem:[#allocation6 + $0xf40] sm:$0xff]
      %v719 = vld [vmem:[#allocation6 + $0xf48] sm:$0xff]
      %v720 = vld [vmem:[#allocation6 + $0xf50] sm:$0xff]
      %v721 = vld [vmem:[#allocation6 + $0xf58] sm:$0xff]
      %v722 = vld [vmem:[#allocation6 + $0xf60] sm:$0xff]
      %v723 = vld [vmem:[#allocation6 + $0xf68] sm:$0xff]
      %v724 = vld [vmem:[#allocation6 + $0xf70] sm:$0xff]
      %v725 = vld [vmem:[#allocation6 + $0xf78] sm:$0xff]
      %v726 = vld [vmem:[#allocation6 + $0xf80] sm:$0xff]
      %v727 = vld [vmem:[#allocation6 + $0xf88] sm:$0xff]
      %v728 = vld [vmem:[#allocation6 + $0xf90] sm:$0xff]
      %v729 = vld [vmem:[#allocation6 + $0xf98] sm:$0xff]
      %v730 = vld [vmem:[#allocation6 + $0xfa0] sm:$0xff]
      %v731 = vld [vmem:[#allocation6 + $0xfa8] sm:$0xff]
      %v732 = vld [vmem:[#allocation6 + $0xfb0] sm:$0xff]
      %v733 = vld [vmem:[#allocation6 + $0xfb8] sm:$0xff]
      %v734 = vld [vmem:[#allocation6 + $0xfc0] sm:$0xff]
      %v735 = vld [vmem:[#allocation6 + $0xfc8] sm:$0xff]
      %v736 = vld [vmem:[#allocation6 + $0xfd0] sm:$0xff]
      %v737 = vld [vmem:[#allocation6 + $0xfd8] sm:$0xff]
      %v738 = vld [vmem:[#allocation6 + $0xfe0] sm:$0xff]
      %v739 = vld [vmem:[#allocation6 + $0xfe8] sm:$0xff]
      %v740 = vld [vmem:[#allocation6 + $0xff0] sm:$0xff]
      %v741 = vld [vmem:[#allocation6 + $0xff8] sm:$0xff]
      %v742 = vld [vmem:[#allocation6 + $0x1000] sm:$0xff]
      %v743 = vld [vmem:[#allocation6 + $0x1008] sm:$0xff]
      %v744 = vld [vmem:[#allocation6 + $0x1010] sm:$0xff]
      %v745 = vld [vmem:[#allocation6 + $0x1018] sm:$0xff]
      %v746 = vld [vmem:[#allocation6 + $0x1020] sm:$0xff]
      %v747 = vld [vmem:[#allocation6 + $0x1028] sm:$0xff]
      %v748 = vld [vmem:[#allocation6 + $0x1030] sm:$0xff]
      %v749 = vld [vmem:[#allocation6 + $0x1038] sm:$0xff]
      %v750 = vld [vmem:[#allocation6 + $0x1040] sm:$0xff]
      %v751 = vld [vmem:[#allocation6 + $0x1048] sm:$0xff]
      %v752 = vld [vmem:[#allocation6 + $0x1050] sm:$0xff]
      %v753 = vld [vmem:[#allocation6 + $0x1058] sm:$0xff]
      %v754 = vld [vmem:[#allocation6 + $0x1060] sm:$0xff]
      %v755 = vld [vmem:[#allocation6 + $0x1068] sm:$0xff]
      %v756 = vld [vmem:[#allocation6 + $0x1070] sm:$0xff]
      %v757 = vld [vmem:[#allocation6 + $0x1078] sm:$0xff]
      %v758 = vld [vmem:[#allocation6 + $0x1080] sm:$0xff]
      %v759 = vld [vmem:[#allocation6 + $0x1088] sm:$0xff]
      %v760 = vld [vmem:[#allocation6 + $0x1090] sm:$0xff]
      %v761 = vld [vmem:[#allocation6 + $0x1098] sm:$0xff]
      %v762 = vld [vmem:[#allocation6 + $0x10a0] sm:$0xff]
      %v763 = vld [vmem:[#allocation6 + $0x10a8] sm:$0xff]
      %v764 = vld [vmem:[#allocation6 + $0x10b0] sm:$0xff]
      %v765 = vld [vmem:[#allocation6 + $0x10b8] sm:$0xff]
      %v766 = vld [vmem:[#allocation6 + $0x10c0] sm:$0xff]
      %v767 = vld [vmem:[#allocation6 + $0x10c8] sm:$0xff]
      %v768 = vld [vmem:[#allocation6 + $0x10d0] sm:$0xff]
      %v769 = vld [vmem:[#allocation6 + $0x10d8] sm:$0xff]
      %v770 = vld [vmem:[#allocation6 + $0x10e0] sm:$0xff]
      %v771 = vld [vmem:[#allocation6 + $0x10e8] sm:$0xff]
      %v772 = vld [vmem:[#allocation6 + $0x10f0] sm:$0xff]
      %v773 = vld [vmem:[#allocation6 + $0x10f8] sm:$0xff]
      %v774 = vld [vmem:[#allocation6 + $0x1100] sm:$0xff]
      %v775 = vld [vmem:[#allocation6 + $0x1108] sm:$0xff]
      %v776 = vld [vmem:[#allocation6 + $0x1110] sm:$0xff]
      %v777 = vld [vmem:[#allocation6 + $0x1118] sm:$0xff]
      %v778 = vld [vmem:[#allocation6 + $0x1120] sm:$0xff]
      %v779 = vld [vmem:[#allocation6 + $0x1128] sm:$0xff]
      %v780 = vld [vmem:[#allocation6 + $0x1130] sm:$0xff]
      %v781 = vld [vmem:[#allocation6 + $0x1138] sm:$0xff]
      %v782 = vld [vmem:[#allocation6 + $0x1140] sm:$0xff]
      %v783 = vld [vmem:[#allocation6 + $0x1148] sm:$0xff]
      %v784 = vld [vmem:[#allocation6 + $0x1150] sm:$0xff]
      %v785 = vld [vmem:[#allocation6 + $0x1158] sm:$0xff]
      %v786 = vld [vmem:[#allocation6 + $0x1160] sm:$0xff]
      %v787 = vld [vmem:[#allocation6 + $0x1168] sm:$0xff]
      %v788 = vld [vmem:[#allocation6 + $0x1170] sm:$0xff]
      %v789 = vld [vmem:[#allocation6 + $0x1178] sm:$0xff]
      %v790 = vld [vmem:[#allocation6 + $0x1180] sm:$0xff]
      %v791 = vld [vmem:[#allocation6 + $0x1188] sm:$0xff]
      %v792 = vld [vmem:[#allocation6 + $0x1190] sm:$0xff]
      %v793 = vld [vmem:[#allocation6 + $0x1198] sm:$0xff]
      %v794 = vld [vmem:[#allocation6 + $0x11a0] sm:$0xff]
      %v795 = vld [vmem:[#allocation6 + $0x11a8] sm:$0xff]
      %v796 = vld [vmem:[#allocation6 + $0x11b0] sm:$0xff]
      %v797 = vld [vmem:[#allocation6 + $0x11b8] sm:$0xff]
      %v798 = vld [vmem:[#allocation6 + $0x11c0] sm:$0xff]
      %v799 = vld [vmem:[#allocation6 + $0x11c8] sm:$0xff]
      %v800 = vld [vmem:[#allocation6 + $0x11d0] sm:$0xff]
      %v801 = vld [vmem:[#allocation6 + $0x11d8] sm:$0xff]
      %v802 = vld [vmem:[#allocation6 + $0x11e0] sm:$0xff]
      %v803 = vld [vmem:[#allocation6 + $0x11e8] sm:$0xff]
      %v804 = vld [vmem:[#allocation6 + $0x11f0] sm:$0xff]
      %v805 = vld [vmem:[#allocation6 + $0x11f8] sm:$0xff]
      %v806 = vld [vmem:[#allocation8] sm:$0x3f]
      %v808 = vperm.slane %v806, 0
      %v809 = vperm.slane %v806, 1
      %v810 = vperm.slane %v806, 2
      %v811 = vperm.slane %v806, 3
      %v812 = vperm.slane %v806, 4
      %v813 = vperm.slane %v806, 5
      %822 = vst [vmem:[#allocation1] ss:$4 sm:$0xff] %v228
      %s823 = scalar_lea.vmem [#allocation1], 32
      %824 = vst [vmem:[%s823] ss:$4 sm:$0xff] %v229
      %v825 = vld.sshfl [vmem:[#allocation1] sm:$0xff pattern:$0x73625140]
      %v826 = vld.sshfl [vmem:[#allocation1 + $0x8] sm:$0xff pattern:$0x73625140]
      %v827 = vld.sshfl [vmem:[#allocation1 + $0x10] sm:$0xff pattern:$0x73625140]
      %v828 = vld.sshfl [vmem:[#allocation1 + $0x18] sm:$0xff pattern:$0x73625140]
      %v829 = vld.sshfl [vmem:[#allocation1 + $0x20] sm:$0xff pattern:$0x73625140]
      %v830 = vld.sshfl [vmem:[#allocation1 + $0x28] sm:$0xff pattern:$0x73625140]
      %837 = vmatpush.msra.mxu0 %v320
      %838 = vmatpush.msra.mxu0 %v314
      %839 = vmatpush.msra.mxu0 %v308
      %840 = vmatpush.msra.mxu0 %v302
      %841 = vmatpush.msra.mxu0 %v296
      %842 = vmatpush.msra.mxu0 %v290
      %843 = vmatpush.msra.mxu0 %v284
      %844 = vmatpush.msra.mxu0 %v278
      %845 = vmatpush.msra.mxu0 %v272
      %846 = vmatpush.msra.mxu0 %v266
      %847 = vmatpush.msra.mxu0 %v260
      %848 = vmatpush.msra.mxu0 %v254
      %849 = vmatpush.msra.mxu0 %v248
      %850 = vmatpush.msra.mxu0 %v242
      %851 = vmatpush.msra.mxu0 %v236
      %852 = vmatpush.msra.mxu0 %v230
      %853 = vmatmul.f32.gmra.mxu0 %v825
      %v854 = vpop.f32.mrf.mxu0
      %v855 = vadd.f32 %v808, %v854
      %856 = vdwg.mxu0
      %857 = vmatpush.msra.mxu0 %v416
      %858 = vmatpush.msra.mxu0 %v410
      %859 = vmatpush.msra.mxu0 %v404
      %860 = vmatpush.msra.mxu0 %v398
      %861 = vmatpush.msra.mxu0 %v392
      %862 = vmatpush.msra.mxu0 %v386
      %863 = vmatpush.msra.mxu0 %v380
      %864 = vmatpush.msra.mxu0 %v374
      %865 = vmatpush.msra.mxu0 %v368
      %866 = vmatpush.msra.mxu0 %v362
      %867 = vmatpush.msra.mxu0 %v356
      %868 = vmatpush.msra.mxu0 %v350
      %869 = vmatpush.msra.mxu0 %v344
      %870 = vmatpush.msra.mxu0 %v338
      %871 = vmatpush.msra.mxu0 %v332
      %872 = vmatpush.msra.mxu0 %v326
      %873 = vmatmul.f32.gmra.mxu0 %v826
      %v874 = vpop.f32.mrf.mxu0
      %v875 = vadd.f32 %v855, %v874
      %876 = vdwg.mxu0
      %877 = vmatpush.msra.mxu0 %v512
      %878 = vmatpush.msra.mxu0 %v506
      %879 = vmatpush.msra.mxu0 %v500
      %880 = vmatpush.msra.mxu0 %v494
      %881 = vmatpush.msra.mxu0 %v488
      %882 = vmatpush.msra.mxu0 %v482
      %883 = vmatpush.msra.mxu0 %v476
      %884 = vmatpush.msra.mxu0 %v470
      %885 = vmatpush.msra.mxu0 %v464
      %886 = vmatpush.msra.mxu0 %v458
      %887 = vmatpush.msra.mxu0 %v452
      %888 = vmatpush.msra.mxu0 %v446
      %889 = vmatpush.msra.mxu0 %v440
      %890 = vmatpush.msra.mxu0 %v434
      %891 = vmatpush.msra.mxu0 %v428
      %892 = vmatpush.msra.mxu0 %v422
      %893 = vmatmul.f32.gmra.mxu0 %v827
      %v894 = vpop.f32.mrf.mxu0
      %v895 = vadd.f32 %v875, %v894
      %896 = vdwg.mxu0
      %897 = vmatpush.msra.mxu0 %v608
      %898 = vmatpush.msra.mxu0 %v602
      %899 = vmatpush.msra.mxu0 %v596
      %900 = vmatpush.msra.mxu0 %v590
      %901 = vmatpush.msra.mxu0 %v584
      %902 = vmatpush.msra.mxu0 %v578
      %903 = vmatpush.msra.mxu0 %v572
      %904 = vmatpush.msra.mxu0 %v566
      %905 = vmatpush.msra.mxu0 %v560
      %906 = vmatpush.msra.mxu0 %v554
      %907 = vmatpush.msra.mxu0 %v548
      %908 = vmatpush.msra.mxu0 %v542
      %909 = vmatpush.msra.mxu0 %v536
      %910 = vmatpush.msra.mxu0 %v530
      %911 = vmatpush.msra.mxu0 %v524
      %912 = vmatpush.msra.mxu0 %v518
      %913 = vmatmul.f32.gmra.mxu0 %v828
      %v914 = vpop.f32.mrf.mxu0
      %v915 = vadd.f32 %v895, %v914
      %916 = vdwg.mxu0
      %917 = vmatpush.msra.mxu0 %v704
      %918 = vmatpush.msra.mxu0 %v698
      %919 = vmatpush.msra.mxu0 %v692
      %920 = vmatpush.msra.mxu0 %v686
      %921 = vmatpush.msra.mxu0 %v680
      %922 = vmatpush.msra.mxu0 %v674
      %923 = vmatpush.msra.mxu0 %v668
      %924 = vmatpush.msra.mxu0 %v662
      %925 = vmatpush.msra.mxu0 %v656
      %926 = vmatpush.msra.mxu0 %v650
      %927 = vmatpush.msra.mxu0 %v644
      %928 = vmatpush.msra.mxu0 %v638
      %929 = vmatpush.msra.mxu0 %v632
      %930 = vmatpush.msra.mxu0 %v626
      %931 = vmatpush.msra.mxu0 %v620
      %932 = vmatpush.msra.mxu0 %v614
      %933 = vmatmul.f32.gmra.mxu0 %v829
      %v934 = vpop.f32.mrf.mxu0
      %v935 = vadd.f32 %v915, %v934
      %936 = vdwg.mxu0
      %937 = vmatpush.msra.mxu0 %v800
      %938 = vmatpush.msra.mxu0 %v794
      %939 = vmatpush.msra.mxu0 %v788
      %940 = vmatpush.msra.mxu0 %v782
      %941 = vmatpush.msra.mxu0 %v776
      %942 = vmatpush.msra.mxu0 %v770
      %943 = vmatpush.msra.mxu0 %v764
      %944 = vmatpush.msra.mxu0 %v758
      %945 = vmatpush.msra.mxu0 %v752
      %946 = vmatpush.msra.mxu0 %v746
      %947 = vmatpush.msra.mxu0 %v740
      %948 = vmatpush.msra.mxu0 %v734
      %949 = vmatpush.msra.mxu0 %v728
      %950 = vmatpush.msra.mxu0 %v722
      %951 = vmatpush.msra.mxu0 %v716
      %952 = vmatpush.msra.mxu0 %v710
      %953 = vmatmul.f32.gmra.mxu0 %v830
      %v954 = vpop.f32.mrf.mxu0
      %v955 = vadd.f32 %v935, %v954
      %956 = vdwg.mxu0
      %957 = vmatpush.msra.mxu0 %v321
      %958 = vmatpush.msra.mxu0 %v315
      %959 = vmatpush.msra.mxu0 %v309
      %960 = vmatpush.msra.mxu0 %v303
      %961 = vmatpush.msra.mxu0 %v297
      %962 = vmatpush.msra.mxu0 %v291
      %963 = vmatpush.msra.mxu0 %v285
      %964 = vmatpush.msra.mxu0 %v279
      %965 = vmatpush.msra.mxu0 %v273
      %966 = vmatpush.msra.mxu0 %v267
      %967 = vmatpush.msra.mxu0 %v261
      %968 = vmatpush.msra.mxu0 %v255
      %969 = vmatpush.msra.mxu0 %v249
      %970 = vmatpush.msra.mxu0 %v243
      %971 = vmatpush.msra.mxu0 %v237
      %972 = vmatpush.msra.mxu0 %v231
      %973 = vmatmul.f32.gmra.mxu0 %v825
      %v974 = vpop.f32.mrf.mxu0
      %v975 = vadd.f32 %v809, %v974
      %976 = vdwg.mxu0
      %977 = vmatpush.msra.mxu0 %v417
      %978 = vmatpush.msra.mxu0 %v411
      %979 = vmatpush.msra.mxu0 %v405
      %980 = vmatpush.msra.mxu0 %v399
      %981 = vmatpush.msra.mxu0 %v393
      %982 = vmatpush.msra.mxu0 %v387
      %983 = vmatpush.msra.mxu0 %v381
      %984 = vmatpush.msra.mxu0 %v375
      %985 = vmatpush.msra.mxu0 %v369
      %986 = vmatpush.msra.mxu0 %v363
      %987 = vmatpush.msra.mxu0 %v357
      %988 = vmatpush.msra.mxu0 %v351
      %989 = vmatpush.msra.mxu0 %v345
      %990 = vmatpush.msra.mxu0 %v339
      %991 = vmatpush.msra.mxu0 %v333
      %992 = vmatpush.msra.mxu0 %v327
      %993 = vmatmul.f32.gmra.mxu0 %v826
      %v994 = vpop.f32.mrf.mxu0
      %v995 = vadd.f32 %v975, %v994
      %996 = vdwg.mxu0
      %997 = vmatpush.msra.mxu0 %v513
      %998 = vmatpush.msra.mxu0 %v507
      %999 = vmatpush.msra.mxu0 %v501
      %1000 = vmatpush.msra.mxu0 %v495
      %1001 = vmatpush.msra.mxu0 %v489
      %1002 = vmatpush.msra.mxu0 %v483
      %1003 = vmatpush.msra.mxu0 %v477
      %1004 = vmatpush.msra.mxu0 %v471
      %1005 = vmatpush.msra.mxu0 %v465
      %1006 = vmatpush.msra.mxu0 %v459
      %1007 = vmatpush.msra.mxu0 %v453
      %1008 = vmatpush.msra.mxu0 %v447
      %1009 = vmatpush.msra.mxu0 %v441
      %1010 = vmatpush.msra.mxu0 %v435
      %1011 = vmatpush.msra.mxu0 %v429
      %1012 = vmatpush.msra.mxu0 %v423
      %1013 = vmatmul.f32.gmra.mxu0 %v827
      %v1014 = vpop.f32.mrf.mxu0
      %v1015 = vadd.f32 %v995, %v1014
      %1016 = vdwg.mxu0
      %1017 = vmatpush.msra.mxu0 %v609
      %1018 = vmatpush.msra.mxu0 %v603
      %1019 = vmatpush.msra.mxu0 %v597
      %1020 = vmatpush.msra.mxu0 %v591
      %1021 = vmatpush.msra.mxu0 %v585
      %1022 = vmatpush.msra.mxu0 %v579
      %1023 = vmatpush.msra.mxu0 %v573
      %1024 = vmatpush.msra.mxu0 %v567
      %1025 = vmatpush.msra.mxu0 %v561
      %1026 = vmatpush.msra.mxu0 %v555
      %1027 = vmatpush.msra.mxu0 %v549
      %1028 = vmatpush.msra.mxu0 %v543
      %1029 = vmatpush.msra.mxu0 %v537
      %1030 = vmatpush.msra.mxu0 %v531
      %1031 = vmatpush.msra.mxu0 %v525
      %1032 = vmatpush.msra.mxu0 %v519
      %1033 = vmatmul.f32.gmra.mxu0 %v828
      %v1034 = vpop.f32.mrf.mxu0
      %v1035 = vadd.f32 %v1015, %v1034
      %1036 = vdwg.mxu0
      %1037 = vmatpush.msra.mxu0 %v705
      %1038 = vmatpush.msra.mxu0 %v699
      %1039 = vmatpush.msra.mxu0 %v693
      %1040 = vmatpush.msra.mxu0 %v687
      %1041 = vmatpush.msra.mxu0 %v681
      %1042 = vmatpush.msra.mxu0 %v675
      %1043 = vmatpush.msra.mxu0 %v669
      %1044 = vmatpush.msra.mxu0 %v663
      %1045 = vmatpush.msra.mxu0 %v657
      %1046 = vmatpush.msra.mxu0 %v651
      %1047 = vmatpush.msra.mxu0 %v645
      %1048 = vmatpush.msra.mxu0 %v639
      %1049 = vmatpush.msra.mxu0 %v633
      %1050 = vmatpush.msra.mxu0 %v627
      %1051 = vmatpush.msra.mxu0 %v621
      %1052 = vmatpush.msra.mxu0 %v615
      %1053 = vmatmul.f32.gmra.mxu0 %v829
      %v1054 = vpop.f32.mrf.mxu0
      %v1055 = vadd.f32 %v1035, %v1054
      %1056 = vdwg.mxu0
      %1057 = vmatpush.msra.mxu0 %v801
      %1058 = vmatpush.msra.mxu0 %v795
      %1059 = vmatpush.msra.mxu0 %v789
      %1060 = vmatpush.msra.mxu0 %v783
      %1061 = vmatpush.msra.mxu0 %v777
      %1062 = vmatpush.msra.mxu0 %v771
      %1063 = vmatpush.msra.mxu0 %v765
      %1064 = vmatpush.msra.mxu0 %v759
      %1065 = vmatpush.msra.mxu0 %v753
      %1066 = vmatpush.msra.mxu0 %v747
      %1067 = vmatpush.msra.mxu0 %v741
      %1068 = vmatpush.msra.mxu0 %v735
      %1069 = vmatpush.msra.mxu0 %v729
      %1070 = vmatpush.msra.mxu0 %v723
      %1071 = vmatpush.msra.mxu0 %v717
      %1072 = vmatpush.msra.mxu0 %v711
      %1073 = vmatmul.f32.gmra.mxu0 %v830
      %v1074 = vpop.f32.mrf.mxu0
      %v1075 = vadd.f32 %v1055, %v1074
      %1076 = vdwg.mxu0
      %1077 = vmatpush.msra.mxu0 %v322
      %1078 = vmatpush.msra.mxu0 %v316
      %1079 = vmatpush.msra.mxu0 %v310
      %1080 = vmatpush.msra.mxu0 %v304
      %1081 = vmatpush.msra.mxu0 %v298
      %1082 = vmatpush.msra.mxu0 %v292
      %1083 = vmatpush.msra.mxu0 %v286
      %1084 = vmatpush.msra.mxu0 %v280
      %1085 = vmatpush.msra.mxu0 %v274
      %1086 = vmatpush.msra.mxu0 %v268
      %1087 = vmatpush.msra.mxu0 %v262
      %1088 = vmatpush.msra.mxu0 %v256
      %1089 = vmatpush.msra.mxu0 %v250
      %1090 = vmatpush.msra.mxu0 %v244
      %1091 = vmatpush.msra.mxu0 %v238
      %1092 = vmatpush.msra.mxu0 %v232
      %1093 = vmatmul.f32.gmra.mxu0 %v825
      %v1094 = vpop.f32.mrf.mxu0
      %v1095 = vadd.f32 %v810, %v1094
      %1096 = vdwg.mxu0
      %1097 = vmatpush.msra.mxu0 %v418
      %1098 = vmatpush.msra.mxu0 %v412
      %1099 = vmatpush.msra.mxu0 %v406
      %1100 = vmatpush.msra.mxu0 %v400
      %1101 = vmatpush.msra.mxu0 %v394
      %1102 = vmatpush.msra.mxu0 %v388
      %1103 = vmatpush.msra.mxu0 %v382
      %1104 = vmatpush.msra.mxu0 %v376
      %1105 = vmatpush.msra.mxu0 %v370
      %1106 = vmatpush.msra.mxu0 %v364
      %1107 = vmatpush.msra.mxu0 %v358
      %1108 = vmatpush.msra.mxu0 %v352
      %1109 = vmatpush.msra.mxu0 %v346
      %1110 = vmatpush.msra.mxu0 %v340
      %1111 = vmatpush.msra.mxu0 %v334
      %1112 = vmatpush.msra.mxu0 %v328
      %1113 = vmatmul.f32.gmra.mxu0 %v826
      %v1114 = vpop.f32.mrf.mxu0
      %v1115 = vadd.f32 %v1095, %v1114
      %1116 = vdwg.mxu0
      %1117 = vmatpush.msra.mxu0 %v514
      %1118 = vmatpush.msra.mxu0 %v508
      %1119 = vmatpush.msra.mxu0 %v502
      %1120 = vmatpush.msra.mxu0 %v496
      %1121 = vmatpush.msra.mxu0 %v490
      %1122 = vmatpush.msra.mxu0 %v484
      %1123 = vmatpush.msra.mxu0 %v478
      %1124 = vmatpush.msra.mxu0 %v472
      %1125 = vmatpush.msra.mxu0 %v466
      %1126 = vmatpush.msra.mxu0 %v460
      %1127 = vmatpush.msra.mxu0 %v454
      %1128 = vmatpush.msra.mxu0 %v448
      %1129 = vmatpush.msra.mxu0 %v442
      %1130 = vmatpush.msra.mxu0 %v436
      %1131 = vmatpush.msra.mxu0 %v430
      %1132 = vmatpush.msra.mxu0 %v424
      %1133 = vmatmul.f32.gmra.mxu0 %v827
      %v1134 = vpop.f32.mrf.mxu0
      %v1135 = vadd.f32 %v1115, %v1134
      %1136 = vdwg.mxu0
      %1137 = vmatpush.msra.mxu0 %v610
      %1138 = vmatpush.msra.mxu0 %v604
      %1139 = vmatpush.msra.mxu0 %v598
      %1140 = vmatpush.msra.mxu0 %v592
      %1141 = vmatpush.msra.mxu0 %v586
      %1142 = vmatpush.msra.mxu0 %v580
      %1143 = vmatpush.msra.mxu0 %v574
      %1144 = vmatpush.msra.mxu0 %v568
      %1145 = vmatpush.msra.mxu0 %v562
      %1146 = vmatpush.msra.mxu0 %v556
      %1147 = vmatpush.msra.mxu0 %v550
      %1148 = vmatpush.msra.mxu0 %v544
      %1149 = vmatpush.msra.mxu0 %v538
      %1150 = vmatpush.msra.mxu0 %v532
      %1151 = vmatpush.msra.mxu0 %v526
      %1152 = vmatpush.msra.mxu0 %v520
      %1153 = vmatmul.f32.gmra.mxu0 %v828
      %v1154 = vpop.f32.mrf.mxu0
      %v1155 = vadd.f32 %v1135, %v1154
      %1156 = vdwg.mxu0
      %1157 = vmatpush.msra.mxu0 %v706
      %1158 = vmatpush.msra.mxu0 %v700
      %1159 = vmatpush.msra.mxu0 %v694
      %1160 = vmatpush.msra.mxu0 %v688
      %1161 = vmatpush.msra.mxu0 %v682
      %1162 = vmatpush.msra.mxu0 %v676
      %1163 = vmatpush.msra.mxu0 %v670
      %1164 = vmatpush.msra.mxu0 %v664
      %1165 = vmatpush.msra.mxu0 %v658
      %1166 = vmatpush.msra.mxu0 %v652
      %1167 = vmatpush.msra.mxu0 %v646
      %1168 = vmatpush.msra.mxu0 %v640
      %1169 = vmatpush.msra.mxu0 %v634
      %1170 = vmatpush.msra.mxu0 %v628
      %1171 = vmatpush.msra.mxu0 %v622
      %1172 = vmatpush.msra.mxu0 %v616
      %1173 = vmatmul.f32.gmra.mxu0 %v829
      %v1174 = vpop.f32.mrf.mxu0
      %v1175 = vadd.f32 %v1155, %v1174
      %1176 = vdwg.mxu0
      %1177 = vmatpush.msra.mxu0 %v802
      %1178 = vmatpush.msra.mxu0 %v796
      %1179 = vmatpush.msra.mxu0 %v790
      %1180 = vmatpush.msra.mxu0 %v784
      %1181 = vmatpush.msra.mxu0 %v778
      %1182 = vmatpush.msra.mxu0 %v772
      %1183 = vmatpush.msra.mxu0 %v766
      %1184 = vmatpush.msra.mxu0 %v760
      %1185 = vmatpush.msra.mxu0 %v754
      %1186 = vmatpush.msra.mxu0 %v748
      %1187 = vmatpush.msra.mxu0 %v742
      %1188 = vmatpush.msra.mxu0 %v736
      %1189 = vmatpush.msra.mxu0 %v730
      %1190 = vmatpush.msra.mxu0 %v724
      %1191 = vmatpush.msra.mxu0 %v718
      %1192 = vmatpush.msra.mxu0 %v712
      %1193 = vmatmul.f32.gmra.mxu0 %v830
      %v1194 = vpop.f32.mrf.mxu0
      %v1195 = vadd.f32 %v1175, %v1194
      %1196 = vdwg.mxu0
      %1197 = vmatpush.msra.mxu0 %v323
      %1198 = vmatpush.msra.mxu0 %v317
      %1199 = vmatpush.msra.mxu0 %v311
      %1200 = vmatpush.msra.mxu0 %v305
      %1201 = vmatpush.msra.mxu0 %v299
      %1202 = vmatpush.msra.mxu0 %v293
      %1203 = vmatpush.msra.mxu0 %v287
      %1204 = vmatpush.msra.mxu0 %v281
      %1205 = vmatpush.msra.mxu0 %v275
      %1206 = vmatpush.msra.mxu0 %v269
      %1207 = vmatpush.msra.mxu0 %v263
      %1208 = vmatpush.msra.mxu0 %v257
      %1209 = vmatpush.msra.mxu0 %v251
      %1210 = vmatpush.msra.mxu0 %v245
      %1211 = vmatpush.msra.mxu0 %v239
      %1212 = vmatpush.msra.mxu0 %v233
      %1213 = vmatmul.f32.gmra.mxu0 %v825
      %v1214 = vpop.f32.mrf.mxu0
      %v1215 = vadd.f32 %v811, %v1214
      %1216 = vdwg.mxu0
      %1217 = vmatpush.msra.mxu0 %v419
      %1218 = vmatpush.msra.mxu0 %v413
      %1219 = vmatpush.msra.mxu0 %v407
      %1220 = vmatpush.msra.mxu0 %v401
      %1221 = vmatpush.msra.mxu0 %v395
      %1222 = vmatpush.msra.mxu0 %v389
      %1223 = vmatpush.msra.mxu0 %v383
      %1224 = vmatpush.msra.mxu0 %v377
      %1225 = vmatpush.msra.mxu0 %v371
      %1226 = vmatpush.msra.mxu0 %v365
      %1227 = vmatpush.msra.mxu0 %v359
      %1228 = vmatpush.msra.mxu0 %v353
      %1229 = vmatpush.msra.mxu0 %v347
      %1230 = vmatpush.msra.mxu0 %v341
      %1231 = vmatpush.msra.mxu0 %v335
      %1232 = vmatpush.msra.mxu0 %v329
      %1233 = vmatmul.f32.gmra.mxu0 %v826
      %v1234 = vpop.f32.mrf.mxu0
      %v1235 = vadd.f32 %v1215, %v1234
      %1236 = vdwg.mxu0
      %1237 = vmatpush.msra.mxu0 %v515
      %1238 = vmatpush.msra.mxu0 %v509
      %1239 = vmatpush.msra.mxu0 %v503
      %1240 = vmatpush.msra.mxu0 %v497
      %1241 = vmatpush.msra.mxu0 %v491
      %1242 = vmatpush.msra.mxu0 %v485
      %1243 = vmatpush.msra.mxu0 %v479
      %1244 = vmatpush.msra.mxu0 %v473
      %1245 = vmatpush.msra.mxu0 %v467
      %1246 = vmatpush.msra.mxu0 %v461
      %1247 = vmatpush.msra.mxu0 %v455
      %1248 = vmatpush.msra.mxu0 %v449
      %1249 = vmatpush.msra.mxu0 %v443
      %1250 = vmatpush.msra.mxu0 %v437
      %1251 = vmatpush.msra.mxu0 %v431
      %1252 = vmatpush.msra.mxu0 %v425
      %1253 = vmatmul.f32.gmra.mxu0 %v827
      %v1254 = vpop.f32.mrf.mxu0
      %v1255 = vadd.f32 %v1235, %v1254
      %1256 = vdwg.mxu0
      %1257 = vmatpush.msra.mxu0 %v611
      %1258 = vmatpush.msra.mxu0 %v605
      %1259 = vmatpush.msra.mxu0 %v599
      %1260 = vmatpush.msra.mxu0 %v593
      %1261 = vmatpush.msra.mxu0 %v587
      %1262 = vmatpush.msra.mxu0 %v581
      %1263 = vmatpush.msra.mxu0 %v575
      %1264 = vmatpush.msra.mxu0 %v569
      %1265 = vmatpush.msra.mxu0 %v563
      %1266 = vmatpush.msra.mxu0 %v557
      %1267 = vmatpush.msra.mxu0 %v551
      %1268 = vmatpush.msra.mxu0 %v545
      %1269 = vmatpush.msra.mxu0 %v539
      %1270 = vmatpush.msra.mxu0 %v533
      %1271 = vmatpush.msra.mxu0 %v527
      %1272 = vmatpush.msra.mxu0 %v521
      %1273 = vmatmul.f32.gmra.mxu0 %v828
      %v1274 = vpop.f32.mrf.mxu0
      %v1275 = vadd.f32 %v1255, %v1274
      %1276 = vdwg.mxu0
      %1277 = vmatpush.msra.mxu0 %v707
      %1278 = vmatpush.msra.mxu0 %v701
      %1279 = vmatpush.msra.mxu0 %v695
      %1280 = vmatpush.msra.mxu0 %v689
      %1281 = vmatpush.msra.mxu0 %v683
      %1282 = vmatpush.msra.mxu0 %v677
      %1283 = vmatpush.msra.mxu0 %v671
      %1284 = vmatpush.msra.mxu0 %v665
      %1285 = vmatpush.msra.mxu0 %v659
      %1286 = vmatpush.msra.mxu0 %v653
      %1287 = vmatpush.msra.mxu0 %v647
      %1288 = vmatpush.msra.mxu0 %v641
      %1289 = vmatpush.msra.mxu0 %v635
      %1290 = vmatpush.msra.mxu0 %v629
      %1291 = vmatpush.msra.mxu0 %v623
      %1292 = vmatpush.msra.mxu0 %v617
      %1293 = vmatmul.f32.gmra.mxu0 %v829
      %v1294 = vpop.f32.mrf.mxu0
      %v1295 = vadd.f32 %v1275, %v1294
      %1296 = vdwg.mxu0
      %1297 = vmatpush.msra.mxu0 %v803
      %1298 = vmatpush.msra.mxu0 %v797
      %1299 = vmatpush.msra.mxu0 %v791
      %1300 = vmatpush.msra.mxu0 %v785
      %1301 = vmatpush.msra.mxu0 %v779
      %1302 = vmatpush.msra.mxu0 %v773
      %1303 = vmatpush.msra.mxu0 %v767
      %1304 = vmatpush.msra.mxu0 %v761
      %1305 = vmatpush.msra.mxu0 %v755
      %1306 = vmatpush.msra.mxu0 %v749
      %1307 = vmatpush.msra.mxu0 %v743
      %1308 = vmatpush.msra.mxu0 %v737
      %1309 = vmatpush.msra.mxu0 %v731
      %1310 = vmatpush.msra.mxu0 %v725
      %1311 = vmatpush.msra.mxu0 %v719
      %1312 = vmatpush.msra.mxu0 %v713
      %1313 = vmatmul.f32.gmra.mxu0 %v830
      %v1314 = vpop.f32.mrf.mxu0
      %v1315 = vadd.f32 %v1295, %v1314
      %1316 = vdwg.mxu0
      %1317 = vmatpush.msra.mxu0 %v324
      %1318 = vmatpush.msra.mxu0 %v318
      %1319 = vmatpush.msra.mxu0 %v312
      %1320 = vmatpush.msra.mxu0 %v306
      %1321 = vmatpush.msra.mxu0 %v300
      %1322 = vmatpush.msra.mxu0 %v294
      %1323 = vmatpush.msra.mxu0 %v288
      %1324 = vmatpush.msra.mxu0 %v282
      %1325 = vmatpush.msra.mxu0 %v276
      %1326 = vmatpush.msra.mxu0 %v270
      %1327 = vmatpush.msra.mxu0 %v264
      %1328 = vmatpush.msra.mxu0 %v258
      %1329 = vmatpush.msra.mxu0 %v252
      %1330 = vmatpush.msra.mxu0 %v246
      %1331 = vmatpush.msra.mxu0 %v240
      %1332 = vmatpush.msra.mxu0 %v234
      %1333 = vmatmul.f32.gmra.mxu0 %v825
      %v1334 = vpop.f32.mrf.mxu0
      %v1335 = vadd.f32 %v812, %v1334
      %1336 = vdwg.mxu0
      %1337 = vmatpush.msra.mxu0 %v420
      %1338 = vmatpush.msra.mxu0 %v414
      %1339 = vmatpush.msra.mxu0 %v408
      %1340 = vmatpush.msra.mxu0 %v402
      %1341 = vmatpush.msra.mxu0 %v396
      %1342 = vmatpush.msra.mxu0 %v390
      %1343 = vmatpush.msra.mxu0 %v384
      %1344 = vmatpush.msra.mxu0 %v378
      %1345 = vmatpush.msra.mxu0 %v372
      %1346 = vmatpush.msra.mxu0 %v366
      %1347 = vmatpush.msra.mxu0 %v360
      %1348 = vmatpush.msra.mxu0 %v354
      %1349 = vmatpush.msra.mxu0 %v348
      %1350 = vmatpush.msra.mxu0 %v342
      %1351 = vmatpush.msra.mxu0 %v336
      %1352 = vmatpush.msra.mxu0 %v330
      %1353 = vmatmul.f32.gmra.mxu0 %v826
      %v1354 = vpop.f32.mrf.mxu0
      %v1355 = vadd.f32 %v1335, %v1354
      %1356 = vdwg.mxu0
      %1357 = vmatpush.msra.mxu0 %v516
      %1358 = vmatpush.msra.mxu0 %v510
      %1359 = vmatpush.msra.mxu0 %v504
      %1360 = vmatpush.msra.mxu0 %v498
      %1361 = vmatpush.msra.mxu0 %v492
      %1362 = vmatpush.msra.mxu0 %v486
      %1363 = vmatpush.msra.mxu0 %v480
      %1364 = vmatpush.msra.mxu0 %v474
      %1365 = vmatpush.msra.mxu0 %v468
      %1366 = vmatpush.msra.mxu0 %v462
      %1367 = vmatpush.msra.mxu0 %v456
      %1368 = vmatpush.msra.mxu0 %v450
      %1369 = vmatpush.msra.mxu0 %v444
      %1370 = vmatpush.msra.mxu0 %v438
      %1371 = vmatpush.msra.mxu0 %v432
      %1372 = vmatpush.msra.mxu0 %v426
      %1373 = vmatmul.f32.gmra.mxu0 %v827
      %v1374 = vpop.f32.mrf.mxu0
      %v1375 = vadd.f32 %v1355, %v1374
      %1376 = vdwg.mxu0
      %1377 = vmatpush.msra.mxu0 %v612
      %1378 = vmatpush.msra.mxu0 %v606
      %1379 = vmatpush.msra.mxu0 %v600
      %1380 = vmatpush.msra.mxu0 %v594
      %1381 = vmatpush.msra.mxu0 %v588
      %1382 = vmatpush.msra.mxu0 %v582
      %1383 = vmatpush.msra.mxu0 %v576
      %1384 = vmatpush.msra.mxu0 %v570
      %1385 = vmatpush.msra.mxu0 %v564
      %1386 = vmatpush.msra.mxu0 %v558
      %1387 = vmatpush.msra.mxu0 %v552
      %1388 = vmatpush.msra.mxu0 %v546
      %1389 = vmatpush.msra.mxu0 %v540
      %1390 = vmatpush.msra.mxu0 %v534
      %1391 = vmatpush.msra.mxu0 %v528
      %1392 = vmatpush.msra.mxu0 %v522
      %1393 = vmatmul.f32.gmra.mxu0 %v828
      %v1394 = vpop.f32.mrf.mxu0
      %v1395 = vadd.f32 %v1375, %v1394
      %1396 = vdwg.mxu0
      %1397 = vmatpush.msra.mxu0 %v708
      %1398 = vmatpush.msra.mxu0 %v702
      %1399 = vmatpush.msra.mxu0 %v696
      %1400 = vmatpush.msra.mxu0 %v690
      %1401 = vmatpush.msra.mxu0 %v684
      %1402 = vmatpush.msra.mxu0 %v678
      %1403 = vmatpush.msra.mxu0 %v672
      %1404 = vmatpush.msra.mxu0 %v666
      %1405 = vmatpush.msra.mxu0 %v660
      %1406 = vmatpush.msra.mxu0 %v654
      %1407 = vmatpush.msra.mxu0 %v648
      %1408 = vmatpush.msra.mxu0 %v642
      %1409 = vmatpush.msra.mxu0 %v636
      %1410 = vmatpush.msra.mxu0 %v630
      %1411 = vmatpush.msra.mxu0 %v624
      %1412 = vmatpush.msra.mxu0 %v618
      %1413 = vmatmul.f32.gmra.mxu0 %v829
      %v1414 = vpop.f32.mrf.mxu0
      %v1415 = vadd.f32 %v1395, %v1414
      %1416 = vdwg.mxu0
      %1417 = vmatpush.msra.mxu0 %v804
      %1418 = vmatpush.msra.mxu0 %v798
      %1419 = vmatpush.msra.mxu0 %v792
      %1420 = vmatpush.msra.mxu0 %v786
      %1421 = vmatpush.msra.mxu0 %v780
      %1422 = vmatpush.msra.mxu0 %v774
      %1423 = vmatpush.msra.mxu0 %v768
      %1424 = vmatpush.msra.mxu0 %v762
      %1425 = vmatpush.msra.mxu0 %v756
      %1426 = vmatpush.msra.mxu0 %v750
      %1427 = vmatpush.msra.mxu0 %v744
      %1428 = vmatpush.msra.mxu0 %v738
      %1429 = vmatpush.msra.mxu0 %v732
      %1430 = vmatpush.msra.mxu0 %v726
      %1431 = vmatpush.msra.mxu0 %v720
      %1432 = vmatpush.msra.mxu0 %v714
      %1433 = vmatmul.f32.gmra.mxu0 %v830
      %v1434 = vpop.f32.mrf.mxu0
      %v1435 = vadd.f32 %v1415, %v1434
      %1436 = vdwg.mxu0
      %1437 = vmatpush.msra.mxu0 %v325
      %1438 = vmatpush.msra.mxu0 %v319
      %1439 = vmatpush.msra.mxu0 %v313
      %1440 = vmatpush.msra.mxu0 %v307
      %1441 = vmatpush.msra.mxu0 %v301
      %1442 = vmatpush.msra.mxu0 %v295
      %1443 = vmatpush.msra.mxu0 %v289
      %1444 = vmatpush.msra.mxu0 %v283
      %1445 = vmatpush.msra.mxu0 %v277
      %1446 = vmatpush.msra.mxu0 %v271
      %1447 = vmatpush.msra.mxu0 %v265
      %1448 = vmatpush.msra.mxu0 %v259
      %1449 = vmatpush.msra.mxu0 %v253
      %1450 = vmatpush.msra.mxu0 %v247
      %1451 = vmatpush.msra.mxu0 %v241
      %1452 = vmatpush.msra.mxu0 %v235
      %1453 = vmatmul.f32.gmra.mxu0 %v825
      %v1454 = vpop.f32.mrf.mxu0
      %v1455 = vadd.f32 %v813, %v1454
      %1456 = vdwg.mxu0
      %1457 = vmatpush.msra.mxu0 %v421
      %1458 = vmatpush.msra.mxu0 %v415
      %1459 = vmatpush.msra.mxu0 %v409
      %1460 = vmatpush.msra.mxu0 %v403
      %1461 = vmatpush.msra.mxu0 %v397
      %1462 = vmatpush.msra.mxu0 %v391
      %1463 = vmatpush.msra.mxu0 %v385
      %1464 = vmatpush.msra.mxu0 %v379
      %1465 = vmatpush.msra.mxu0 %v373
      %1466 = vmatpush.msra.mxu0 %v367
      %1467 = vmatpush.msra.mxu0 %v361
      %1468 = vmatpush.msra.mxu0 %v355
      %1469 = vmatpush.msra.mxu0 %v349
      %1470 = vmatpush.msra.mxu0 %v343
      %1471 = vmatpush.msra.mxu0 %v337
      %1472 = vmatpush.msra.mxu0 %v331
      %1473 = vmatmul.f32.gmra.mxu0 %v826
      %v1474 = vpop.f32.mrf.mxu0
      %v1475 = vadd.f32 %v1455, %v1474
      %1476 = vdwg.mxu0
      %1477 = vmatpush.msra.mxu0 %v517
      %1478 = vmatpush.msra.mxu0 %v511
      %1479 = vmatpush.msra.mxu0 %v505
      %1480 = vmatpush.msra.mxu0 %v499
      %1481 = vmatpush.msra.mxu0 %v493
      %1482 = vmatpush.msra.mxu0 %v487
      %1483 = vmatpush.msra.mxu0 %v481
      %1484 = vmatpush.msra.mxu0 %v475
      %1485 = vmatpush.msra.mxu0 %v469
      %1486 = vmatpush.msra.mxu0 %v463
      %1487 = vmatpush.msra.mxu0 %v457
      %1488 = vmatpush.msra.mxu0 %v451
      %1489 = vmatpush.msra.mxu0 %v445
      %1490 = vmatpush.msra.mxu0 %v439
      %1491 = vmatpush.msra.mxu0 %v433
      %1492 = vmatpush.msra.mxu0 %v427
      %1493 = vmatmul.f32.gmra.mxu0 %v827
      %v1494 = vpop.f32.mrf.mxu0
      %v1495 = vadd.f32 %v1475, %v1494
      %1496 = vdwg.mxu0
      %1497 = vmatpush.msra.mxu0 %v613
      %1498 = vmatpush.msra.mxu0 %v607
      %1499 = vmatpush.msra.mxu0 %v601
      %1500 = vmatpush.msra.mxu0 %v595
      %1501 = vmatpush.msra.mxu0 %v589
      %1502 = vmatpush.msra.mxu0 %v583
      %1503 = vmatpush.msra.mxu0 %v577
      %1504 = vmatpush.msra.mxu0 %v571
      %1505 = vmatpush.msra.mxu0 %v565
      %1506 = vmatpush.msra.mxu0 %v559
      %1507 = vmatpush.msra.mxu0 %v553
      %1508 = vmatpush.msra.mxu0 %v547
      %1509 = vmatpush.msra.mxu0 %v541
      %1510 = vmatpush.msra.mxu0 %v535
      %1511 = vmatpush.msra.mxu0 %v529
      %1512 = vmatpush.msra.mxu0 %v523
      %1513 = vmatmul.f32.gmra.mxu0 %v828
      %v1514 = vpop.f32.mrf.mxu0
      %v1515 = vadd.f32 %v1495, %v1514
      %1516 = vdwg.mxu0
      %1517 = vmatpush.msra.mxu0 %v709
      %1518 = vmatpush.msra.mxu0 %v703
      %1519 = vmatpush.msra.mxu0 %v697
      %1520 = vmatpush.msra.mxu0 %v691
      %1521 = vmatpush.msra.mxu0 %v685
      %1522 = vmatpush.msra.mxu0 %v679
      %1523 = vmatpush.msra.mxu0 %v673
      %1524 = vmatpush.msra.mxu0 %v667
      %1525 = vmatpush.msra.mxu0 %v661
      %1526 = vmatpush.msra.mxu0 %v655
      %1527 = vmatpush.msra.mxu0 %v649
      %1528 = vmatpush.msra.mxu0 %v643
      %1529 = vmatpush.msra.mxu0 %v637
      %1530 = vmatpush.msra.mxu0 %v631
      %1531 = vmatpush.msra.mxu0 %v625
      %1532 = vmatpush.msra.mxu0 %v619
      %1533 = vmatmul.f32.gmra.mxu0 %v829
      %v1534 = vpop.f32.mrf.mxu0
      %v1535 = vadd.f32 %v1515, %v1534
      %1536 = vdwg.mxu0
      %1537 = vmatpush.msra.mxu0 %v805
      %1538 = vmatpush.msra.mxu0 %v799
      %1539 = vmatpush.msra.mxu0 %v793
      %1540 = vmatpush.msra.mxu0 %v787
      %1541 = vmatpush.msra.mxu0 %v781
      %1542 = vmatpush.msra.mxu0 %v775
      %1543 = vmatpush.msra.mxu0 %v769
      %1544 = vmatpush.msra.mxu0 %v763
      %1545 = vmatpush.msra.mxu0 %v757
      %1546 = vmatpush.msra.mxu0 %v751
      %1547 = vmatpush.msra.mxu0 %v745
      %1548 = vmatpush.msra.mxu0 %v739
      %1549 = vmatpush.msra.mxu0 %v733
      %1550 = vmatpush.msra.mxu0 %v727
      %1551 = vmatpush.msra.mxu0 %v721
      %1552 = vmatpush.msra.mxu0 %v715
      %1553 = vmatmul.f32.gmra.mxu0 %v830
      %v1554 = vpop.f32.mrf.mxu0
      %v1555 = vadd.f32 %v1535, %v1554
      %1556 = vdwg.mxu0
      %v1557 = vld [vmem:[%s5] sm:$0xff]
      %v1558 = vld [vmem:[%s5 + $0x8] sm:$0xf]
      %1561 = vst [vmem:[#allocation1] ss:$4 sm:$0xff] %v1557
      %s1562 = scalar_lea.vmem [#allocation1], 32
      %1563 = vst [vmem:[%s1562] ss:$4 sm:$0xff] %v1558
      %v1564 = vld.sshfl [vmem:[#allocation1] sm:$0xff pattern:$0x73625140]
      %v1565 = vld.sshfl [vmem:[#allocation1 + $0x8] sm:$0xff pattern:$0x73625140]
      %v1566 = vld.sshfl [vmem:[#allocation1 + $0x10] sm:$0xff pattern:$0x73625140]
      %v1567 = vld.sshfl [vmem:[#allocation1 + $0x18] sm:$0xff pattern:$0x73625140]
      %v1568 = vld.sshfl [vmem:[#allocation1 + $0x20] sm:$0xff pattern:$0x73625140]
      %v1569 = vld.sshfl [vmem:[#allocation1 + $0x28] sm:$0xff pattern:$0x73625140]
      %v1576 = vmul.f32 %v955, %v1564
      %v1577 = vmul.f32 %v1075, %v1565
      %v1578 = vmul.f32 %v1195, %v1566
      %v1579 = vmul.f32 %v1315, %v1567
      %v1580 = vmul.f32 %v1435, %v1568
      %v1581 = vmul.f32 %v1555, %v1569
      %v1582 = vld [vmem:[%s3] sm:$0xff]
      %v1583 = vld [vmem:[%s3 + $0x8] sm:$0xff]
      %v1584 = vld [vmem:[%s3 + $0x10] sm:$0xff]
      %v1585 = vld [vmem:[%s3 + $0x18] sm:$0xff]
      %v1586 = vld [vmem:[%s3 + $0x20] sm:$0xff]
      %v1587 = vld [vmem:[%s3 + $0x28] sm:$0xff]
      %v1588 = vld [vmem:[%s3 + $0x30] sm:$0xff]
      %v1589 = vld [vmem:[%s3 + $0x38] sm:$0xff]
      %v1590 = vld [vmem:[%s3 + $0x40] sm:$0xff]
      %v1591 = vld [vmem:[%s3 + $0x48] sm:$0xff]
      %v1592 = vld [vmem:[%s3 + $0x50] sm:$0xff]
      %v1593 = vld [vmem:[%s3 + $0x58] sm:$0xff]
      %v1594 = vld [vmem:[%s3 + $0x60] sm:$0xff]
      %v1595 = vld [vmem:[%s3 + $0x68] sm:$0xff]
      %v1596 = vld [vmem:[%s3 + $0x70] sm:$0xff]
      %v1597 = vld [vmem:[%s3 + $0x78] sm:$0xff]
      %v1598 = vld [vmem:[%s3 + $0x80] sm:$0xff]
      %v1599 = vld [vmem:[%s3 + $0x88] sm:$0xff]
      %v1600 = vld [vmem:[%s3 + $0x90] sm:$0xff]
      %v1601 = vld [vmem:[%s3 + $0x98] sm:$0xff]
      %v1602 = vld [vmem:[%s3 + $0xa0] sm:$0xff]
      %v1603 = vld [vmem:[%s3 + $0xa8] sm:$0xff]
      %v1604 = vld [vmem:[%s3 + $0xb0] sm:$0xff]
      %v1605 = vld [vmem:[%s3 + $0xb8] sm:$0xff]
      %v1606 = vld [vmem:[%s3 + $0xc0] sm:$0xff]
      %v1607 = vld [vmem:[%s3 + $0xc8] sm:$0xff]
      %v1608 = vld [vmem:[%s3 + $0xd0] sm:$0xff]
      %v1609 = vld [vmem:[%s3 + $0xd8] sm:$0xff]
      %v1610 = vld [vmem:[%s3 + $0xe0] sm:$0xff]
      %v1611 = vld [vmem:[%s3 + $0xe8] sm:$0xff]
      %v1612 = vld [vmem:[%s3 + $0xf0] sm:$0xff]
      %v1613 = vld [vmem:[%s3 + $0xf8] sm:$0xff]
      %v1614 = vld [vmem:[%s3 + $0x100] sm:$0xff]
      %v1615 = vld [vmem:[%s3 + $0x108] sm:$0xff]
      %v1616 = vld [vmem:[%s3 + $0x110] sm:$0xff]
      %v1617 = vld [vmem:[%s3 + $0x118] sm:$0xff]
      %v1618 = vld [vmem:[%s3 + $0x120] sm:$0xff]
      %v1619 = vld [vmem:[%s3 + $0x128] sm:$0xff]
      %v1620 = vld [vmem:[%s3 + $0x130] sm:$0xff]
      %v1621 = vld [vmem:[%s3 + $0x138] sm:$0xff]
      %v1622 = vld [vmem:[%s3 + $0x140] sm:$0xff]
      %v1623 = vld [vmem:[%s3 + $0x148] sm:$0xff]
      %v1624 = vld [vmem:[%s3 + $0x150] sm:$0xff]
      %v1625 = vld [vmem:[%s3 + $0x158] sm:$0xff]
      %v1626 = vld [vmem:[%s3 + $0x160] sm:$0xff]
      %v1627 = vld [vmem:[%s3 + $0x168] sm:$0xff]
      %v1628 = vld [vmem:[%s3 + $0x170] sm:$0xff]
      %v1629 = vld [vmem:[%s3 + $0x178] sm:$0xff]
      %v1630 = vld [vmem:[%s3 + $0x180] sm:$0xff]
      %v1631 = vld [vmem:[%s3 + $0x188] sm:$0xff]
      %v1632 = vld [vmem:[%s3 + $0x190] sm:$0xff]
      %v1633 = vld [vmem:[%s3 + $0x198] sm:$0xff]
      %v1634 = vld [vmem:[%s3 + $0x1a0] sm:$0xff]
      %v1635 = vld [vmem:[%s3 + $0x1a8] sm:$0xff]
      %v1636 = vld [vmem:[%s3 + $0x1b0] sm:$0xff]
      %v1637 = vld [vmem:[%s3 + $0x1b8] sm:$0xff]
      %v1638 = vld [vmem:[%s3 + $0x1c0] sm:$0xff]
      %v1639 = vld [vmem:[%s3 + $0x1c8] sm:$0xff]
      %v1640 = vld [vmem:[%s3 + $0x1d0] sm:$0xff]
      %v1641 = vld [vmem:[%s3 + $0x1d8] sm:$0xff]
      %v1642 = vld [vmem:[%s3 + $0x1e0] sm:$0xff]
      %v1643 = vld [vmem:[%s3 + $0x1e8] sm:$0xff]
      %v1644 = vld [vmem:[%s3 + $0x1f0] sm:$0xff]
      %v1645 = vld [vmem:[%s3 + $0x1f8] sm:$0xff]
      %v1646 = vld [vmem:[%s3 + $0x200] sm:$0xff]
      %v1647 = vld [vmem:[%s3 + $0x208] sm:$0xff]
      %v1648 = vld [vmem:[%s3 + $0x210] sm:$0xff]
      %v1649 = vld [vmem:[%s3 + $0x218] sm:$0xff]
      %v1650 = vld [vmem:[%s3 + $0x220] sm:$0xff]
      %v1651 = vld [vmem:[%s3 + $0x228] sm:$0xff]
      %v1652 = vld [vmem:[%s3 + $0x230] sm:$0xff]
      %v1653 = vld [vmem:[%s3 + $0x238] sm:$0xff]
      %v1654 = vld [vmem:[%s3 + $0x240] sm:$0xff]
      %v1655 = vld [vmem:[%s3 + $0x248] sm:$0xff]
      %v1656 = vld [vmem:[%s3 + $0x250] sm:$0xff]
      %v1657 = vld [vmem:[%s3 + $0x258] sm:$0xff]
      %v1658 = vld [vmem:[%s3 + $0x260] sm:$0xff]
      %v1659 = vld [vmem:[%s3 + $0x268] sm:$0xff]
      %v1660 = vld [vmem:[%s3 + $0x270] sm:$0xff]
      %v1661 = vld [vmem:[%s3 + $0x278] sm:$0xff]
      %v1662 = vld [vmem:[%s3 + $0x280] sm:$0xff]
      %v1663 = vld [vmem:[%s3 + $0x288] sm:$0xff]
      %v1664 = vld [vmem:[%s3 + $0x290] sm:$0xff]
      %v1665 = vld [vmem:[%s3 + $0x298] sm:$0xff]
      %v1666 = vld [vmem:[%s3 + $0x2a0] sm:$0xff]
      %v1667 = vld [vmem:[%s3 + $0x2a8] sm:$0xff]
      %v1668 = vld [vmem:[%s3 + $0x2b0] sm:$0xff]
      %v1669 = vld [vmem:[%s3 + $0x2b8] sm:$0xff]
      %v1670 = vld [vmem:[%s3 + $0x2c0] sm:$0xff]
      %v1671 = vld [vmem:[%s3 + $0x2c8] sm:$0xff]
      %v1672 = vld [vmem:[%s3 + $0x2d0] sm:$0xff]
      %v1673 = vld [vmem:[%s3 + $0x2d8] sm:$0xff]
      %v1674 = vld [vmem:[%s3 + $0x2e0] sm:$0xff]
      %v1675 = vld [vmem:[%s3 + $0x2e8] sm:$0xff]
      %v1676 = vld [vmem:[%s3 + $0x2f0] sm:$0xff]
      %v1677 = vld [vmem:[%s3 + $0x2f8] sm:$0xff]
      %v1678 = vld [vmem:[%s4] sm:$0x1]
      %v1680 = vperm.slane %v1678, 0
      %1682 = vmatpush.msra.mxu0 %v1597
      %1683 = vmatpush.msra.mxu0 %v1596
      %1684 = vmatpush.msra.mxu0 %v1595
      %1685 = vmatpush.msra.mxu0 %v1594
      %1686 = vmatpush.msra.mxu0 %v1593
      %1687 = vmatpush.msra.mxu0 %v1592
      %1688 = vmatpush.msra.mxu0 %v1591
      %1689 = vmatpush.msra.mxu0 %v1590
      %1690 = vmatpush.msra.mxu0 %v1589
      %1691 = vmatpush.msra.mxu0 %v1588
      %1692 = vmatpush.msra.mxu0 %v1587
      %1693 = vmatpush.msra.mxu0 %v1586
      %1694 = vmatpush.msra.mxu0 %v1585
      %1695 = vmatpush.msra.mxu0 %v1584
      %1696 = vmatpush.msra.mxu0 %v1583
      %1697 = vmatpush.msra.mxu0 %v1582
      %1698 = vmatmul.f32.gmra.mxu0 %v1576
      %v1699 = vpop.f32.mrf.mxu0
      %v1700 = vadd.f32 %v1680, %v1699
      %1701 = vdwg.mxu0
      %1702 = vmatpush.msra.mxu0 %v1613
      %1703 = vmatpush.msra.mxu0 %v1612
      %1704 = vmatpush.msra.mxu0 %v1611
      %1705 = vmatpush.msra.mxu0 %v1610
      %1706 = vmatpush.msra.mxu0 %v1609
      %1707 = vmatpush.msra.mxu0 %v1608
      %1708 = vmatpush.msra.mxu0 %v1607
      %1709 = vmatpush.msra.mxu0 %v1606
      %1710 = vmatpush.msra.mxu0 %v1605
      %1711 = vmatpush.msra.mxu0 %v1604
      %1712 = vmatpush.msra.mxu0 %v1603
      %1713 = vmatpush.msra.mxu0 %v1602
      %1714 = vmatpush.msra.mxu0 %v1601
      %1715 = vmatpush.msra.mxu0 %v1600
      %1716 = vmatpush.msra.mxu0 %v1599
      %1717 = vmatpush.msra.mxu0 %v1598
      %1718 = vmatmul.f32.gmra.mxu0 %v1577
      %v1719 = vpop.f32.mrf.mxu0
      %v1720 = vadd.f32 %v1700, %v1719
      %1721 = vdwg.mxu0
      %1722 = vmatpush.msra.mxu0 %v1629
      %1723 = vmatpush.msra.mxu0 %v1628
      %1724 = vmatpush.msra.mxu0 %v1627
      %1725 = vmatpush.msra.mxu0 %v1626
      %1726 = vmatpush.msra.mxu0 %v1625
      %1727 = vmatpush.msra.mxu0 %v1624
      %1728 = vmatpush.msra.mxu0 %v1623
      %1729 = vmatpush.msra.mxu0 %v1622
      %1730 = vmatpush.msra.mxu0 %v1621
      %1731 = vmatpush.msra.mxu0 %v1620
      %1732 = vmatpush.msra.mxu0 %v1619
      %1733 = vmatpush.msra.mxu0 %v1618
      %1734 = vmatpush.msra.mxu0 %v1617
      %1735 = vmatpush.msra.mxu0 %v1616
      %1736 = vmatpush.msra.mxu0 %v1615
      %1737 = vmatpush.msra.mxu0 %v1614
      %1738 = vmatmul.f32.gmra.mxu0 %v1578
      %v1739 = vpop.f32.mrf.mxu0
      %v1740 = vadd.f32 %v1720, %v1739
      %1741 = vdwg.mxu0
      %1742 = vmatpush.msra.mxu0 %v1645
      %1743 = vmatpush.msra.mxu0 %v1644
      %1744 = vmatpush.msra.mxu0 %v1643
      %1745 = vmatpush.msra.mxu0 %v1642
      %1746 = vmatpush.msra.mxu0 %v1641
      %1747 = vmatpush.msra.mxu0 %v1640
      %1748 = vmatpush.msra.mxu0 %v1639
      %1749 = vmatpush.msra.mxu0 %v1638
      %1750 = vmatpush.msra.mxu0 %v1637
      %1751 = vmatpush.msra.mxu0 %v1636
      %1752 = vmatpush.msra.mxu0 %v1635
      %1753 = vmatpush.msra.mxu0 %v1634
      %1754 = vmatpush.msra.mxu0 %v1633
      %1755 = vmatpush.msra.mxu0 %v1632
      %1756 = vmatpush.msra.mxu0 %v1631
      %1757 = vmatpush.msra.mxu0 %v1630
      %1758 = vmatmul.f32.gmra.mxu0 %v1579
      %v1759 = vpop.f32.mrf.mxu0
      %v1760 = vadd.f32 %v1740, %v1759
      %1761 = vdwg.mxu0
      %1762 = vmatpush.msra.mxu0 %v1661
      %1763 = vmatpush.msra.mxu0 %v1660
      %1764 = vmatpush.msra.mxu0 %v1659
      %1765 = vmatpush.msra.mxu0 %v1658
      %1766 = vmatpush.msra.mxu0 %v1657
      %1767 = vmatpush.msra.mxu0 %v1656
      %1768 = vmatpush.msra.mxu0 %v1655
      %1769 = vmatpush.msra.mxu0 %v1654
      %1770 = vmatpush.msra.mxu0 %v1653
      %1771 = vmatpush.msra.mxu0 %v1652
      %1772 = vmatpush.msra.mxu0 %v1651
      %1773 = vmatpush.msra.mxu0 %v1650
      %1774 = vmatpush.msra.mxu0 %v1649
      %1775 = vmatpush.msra.mxu0 %v1648
      %1776 = vmatpush.msra.mxu0 %v1647
      %1777 = vmatpush.msra.mxu0 %v1646
      %1778 = vmatmul.f32.gmra.mxu0 %v1580
      %v1779 = vpop.f32.mrf.mxu0
      %v1780 = vadd.f32 %v1760, %v1779
      %1781 = vdwg.mxu0
      %1782 = vmatpush.msra.mxu0 %v1677
      %1783 = vmatpush.msra.mxu0 %v1676
      %1784 = vmatpush.msra.mxu0 %v1675
      %1785 = vmatpush.msra.mxu0 %v1674
      %1786 = vmatpush.msra.mxu0 %v1673
      %1787 = vmatpush.msra.mxu0 %v1672
      %1788 = vmatpush.msra.mxu0 %v1671
      %1789 = vmatpush.msra.mxu0 %v1670
      %1790 = vmatpush.msra.mxu0 %v1669
      %1791 = vmatpush.msra.mxu0 %v1668
      %1792 = vmatpush.msra.mxu0 %v1667
      %1793 = vmatpush.msra.mxu0 %v1666
      %1794 = vmatpush.msra.mxu0 %v1665
      %1795 = vmatpush.msra.mxu0 %v1664
      %1796 = vmatpush.msra.mxu0 %v1663
      %1797 = vmatpush.msra.mxu0 %v1662
      %1798 = vmatmul.f32.gmra.mxu0 %v1581
      %v1799 = vpop.f32.mrf.mxu0
      %v1800 = vadd.f32 %v1780, %v1799
      %1801 = vdwg.mxu0
      %1802 = vst [vmem:[#allocation9] sm:$0x3] %v1800
      %v1803 = vsel %vm186, %v1800, -inf
      %1804 = vmax.xlane.f32.xlu0 %v1803
      %v1805 = vpop.xlane.xlu0 %1804
      %v1806 = vsub.f32 %v1800, %v1805
      %v1807 = vmul.f32 %v1806, 1.442695
      %v1808 = vpow.pop %v1807
      %v1809 = vsel %vm186, %v1808, 0.0
      %1810 = vadd.xlane.f32.xlu0 %v1809
      %v1811 = vpop.xlane.xlu0 %1810
      %v1812 = vlog2.pop %v1811
      %v1813 = vmul.f32 %v1812, 0.6931472
      %v1814 = vadd.f32 %v1813, %v1805
      %v1815 = vlaneseq
      %v1816 = vand.u32 %v1815, 127
      %v1817 = vld [vmem:[%s6] sm:$0x3]
      %1818 = vset.pattern.permute.xlu0 0
      %1819 = vperm.xlu0 %1818, %v1817
      %v1820 = vpop.permute.xlu0 %1819
      %vm1821 = vcmp.eq.s32.totalorder %v1816, %v1820
      %v1822 = vsel %vm1821, 1, 0
      %v1823 = vcvt.s32.f32 %v1822
      %v1824 = vmul.f32 %v1823, %v1800
      %v1825 = vsel %vm186, %v1824, 0.0
      %1826 = vadd.xlane.f32.xlu0 %v1825
      %v1827 = vpop.xlane.xlu0 %1826
      %v1828 = vsub.f32 %v1814, %v1827
      %vm1829 = vcmask 1024
      %1830 = vst.msk [vmem:[%s8] sm:$0x3] %vm1829, %v1828
    $region49: #{audio_model_forward.1} parent=1 // pred_fallthru
      _
    // Predicated region
    $region50: #{audio_model_forward.1} parent=1 // pred_check
      _
    $region51: #{audio_model_forward.1} parent=1 // pred_check_branch
      %1832 = sbr.rel (0) target = $region53
    $region52: #{audio_model_forward.1} parent=1 // pred_region
      %1834 = vsyncadd [#allocation5], 0
      %s1836 = sshll.u32 [#allocation9], 4
      %s1837 = int_to_ptr.vmem [resolvable:$true] %s1836
      %s1838 = sshll.u32 %s7, 4
      %s1839 = int_to_ptr.hbm [resolvable:$true] %s1838
      %1841 = dma.vmem_to_hbm [thread:$0]  %s1837, 32, %s1839, [#allocation5]
    $region53: #{audio_model_forward.1} parent=1 // pred_fallthru
      _
    // Predicated region
    $region54: #{audio_model_forward.1} parent=1 // pred_check
      _
    $region55: #{audio_model_forward.1} parent=1 // pred_check_branch
      %1843 = sbr.rel (0) target = $region57
    $region56: #{audio_model_forward.1} parent=1 // pred_region
      _
    $region57: #{audio_model_forward.1} parent=1 // pred_fallthru
      _
    // Predicated region
    $region58: #{audio_model_forward.1} parent=1 // pred_check
      _
    $region59: #{audio_model_forward.1} parent=1 // pred_check_branch
      %1845 = sbr.rel (0) target = $region61
    $region60: #{audio_model_forward.1} parent=1 // pred_region
      %1847 = dma.done [#allocation5], 32
    $region61: #{audio_model_forward.1} parent=1 // pred_fallthru
      _
    // Predicated region
    $region62: #{audio_model_forward.1} parent=1 // pred_check
      _
    $region63: #{audio_model_forward.1} parent=1 // pred_check_branch
      %1849 = sbr.rel (0) target = $region65
    $region64: #{audio_model_forward.1} parent=1 // pred_region
      _
    $region65: #{audio_model_forward.1} parent=1 // pred_fallthru
      _
    %1850 = vsyncpa [#allocation4], 1
    %1851 = vsyncpa [#allocation7], 1
    %1852 = vsyncpa [#allocation5], 1

</llo_original>
